<compile_context>
chip_gen: v6e
topology: v6e:2x2x1
jax: 0.10.0
libtpu: 0.0.40
codegen_flags: <defaults>
</compile_context>

<pallas_src>
import functools

import numpy as np
import jax
import jax.numpy as jnp
from jax.experimental import pallas as pl
from jax.experimental.pallas import tpu as pltpu


def _ru16(n):
    """Round up to a multiple of 16 (bf16 sublane tile) -- used identically on host & in kernel."""
    return ((n + 15) // 16) * 16


# ----------------------------------------------------------------------------
# Fused Pallas kernel
# ----------------------------------------------------------------------------
def _bnn_fused_kernel(x1_ref, st_ref, ld_ref, eps_ref, mask_ref, exp_ref,
                      s1_ref, r1_ref, s2_ref, r2_ref, s3_ref,
                      wimg_ref, wst_ref, b_ref,
                      act_ref, loss_ref, *, min_std, max_std):
    bf16 = jnp.bfloat16
    dotf = lambda a, b: jnp.dot(a, b, preferred_element_type=jnp.float32)

    A = act_ref.shape[1]
    hidden = wst_ref.shape[1]

    # ---- image encoder conv1 (3x3 / stride 2 / pad 1):
    # 3 row-tap selection matmuls, one lane-aligned concat, ONE wide-K matmul
    # against the stacked, column-folded weights.  Accumulation in f32.
    x1 = x1_ref[...].astype(bf16)                                          # (B*H, 128)
    t1 = jnp.concatenate(
        [dotf(s1_ref[i], x1) for i in range(s1_ref.shape[0])], axis=-1)    # (B*OH1, 3*128)
    h1 = jnp.maximum(dotf(t1.astype(bf16), r1_ref[...])
                     + b_ref[0:1, :r1_ref.shape[1]], 0.0)                  # (B*OH1, OW1*C)

    # ---- conv2: same consolidation; pieces are already 128-lane aligned.
    h1b = h1.astype(bf16)
    t2 = jnp.concatenate(
        [dotf(s2_ref[i], h1b) for i in range(s2_ref.shape[0])], axis=-1)   # (B*OH2, 3*OW1*C)
    h2 = jnp.maximum(dotf(t2.astype(bf16), r2_ref[...])
                     + b_ref[1:2, :r2_ref.shape[1]], 0.0)                  # (B*OH2, OW2*C)

    # ---- image fc head: the NHWC flatten is per-output-row selection matmuls +
    # one lane concat; mu/std weights are merged (split with a static 4-lane slice).
    h2b = h2.astype(bf16)
    feat = jnp.concatenate(
        [dotf(s3_ref[r], h2b) for r in range(s3_ref.shape[0])], axis=-1)   # (B, feat_dim)
    z_img = dotf(feat.astype(bf16), wimg_ref[...]) + b_ref[4:5, :2 * A]
    mu_img = z_img[:, :A]
    std_img = min_std + (max_std - min_std) * jax.nn.sigmoid(z_img[:, A:])

    # ---- state encoder MLP: first layer split over (state, lidar) so the host-side
    # concatenate is never needed; all weights come from one packed slab.
    sd, ldim = st_ref.shape[1], ld_ref.shape[1]
    o_l = _ru16(sd)
    o_2 = _ru16(o_l + ldim)
    o_3 = o_2 + hidden
    st = st_ref[...].astype(bf16)
    ld = ld_ref[...].astype(bf16)
    h = (dotf(st, wst_ref[0:sd, :]) + dotf(ld, wst_ref[o_l:o_l + ldim, :])
         + b_ref[2:3, :hidden])
    h = jnp.maximum(h, 0.0)
    h = jnp.maximum(dotf(h.astype(bf16), wst_ref[o_2:o_2 + hidden, :])
                    + b_ref[3:4, :hidden], 0.0)
    z_state = (dotf(h.astype(bf16), wst_ref[o_3:o_3 + hidden, :])[:, :2 * A]
               + b_ref[5:6, :2 * A])
    mu_state = z_state[:, :A]
    std_state = min_std + (max_std - min_std) * jax.nn.sigmoid(z_state[:, A:])

    # ---- Normal.rsample (pre-drawn eps), random mixing, MSE loss (all f32 VPU work).
    eps = eps_ref[...]
    act_img = mu_img + std_img * eps[:, :A]
    act_state = mu_state + std_state * eps[:, A:]
    action = jnp.where(mask_ref[...] > 0.5, act_img, act_state)
    act_ref[...] = action

    diff = action - exp_ref[...]
    inv_n = 1.0 / float(diff.shape[0] * diff.shape[1])
    loss_ref[...] = jnp.sum(diff * diff, axis=(0, 1), keepdims=True) * inv_n
    # TODO(synk): deterministic=True branch / act() (std-comparison selection) not fused here.


# ----------------------------------------------------------------------------
# Host-side construction of the selection / weight-fold matrices (done once)
# ----------------------------------------------------------------------------
def _sel_rows(B, H_in, OH, k, stride, pad):
    """S[i, b*OH+oh, b*H_in+h] = 1 where h = stride*oh + i - pad (valid rows only)."""
    S = np.zeros((k, B * OH, B * H_in), np.float32)
    for i in range(k):
        for b in range(B):
            for oh in range(OH):
                h = stride * oh + i - pad
                if 0 <= h < H_in:
                    S[i, b * OH + oh, b * H_in + h] = 1.0
    return S


def _fold_cols(w_hwio, W_in, OW, stride, pad):
    """R[i, w*Cin+ci, ow*Cout+co] = sum_j [w == stride*ow+j-pad] * w_hwio[i,j,ci,co]."""
    k, _, cin, cout = w_hwio.shape
    R = np.zeros((k, W_in * cin, OW * cout), np.float32)
    for i in range(k):
        for j in range(k):
            for ow in range(OW):
                wc = stride * ow + j - pad
                if 0 <= wc < W_in:
                    R[i, wc * cin:(wc + 1) * cin, ow * cout:(ow + 1) * cout] += w_hwio[i, j]
    return R


def init_params(key, *, hidden=32, action_dim=2, nc=5, H=16, W=16,
                state_dim=275, k=3, stride=2, pad=1):
    """Raw ("torch-equivalent") weights in JAX-natural layouts (HWIO convs, (in,out) linears)."""
    OH1 = (H + 2 * pad - k) // stride + 1
    OW1 = (W + 2 * pad - k) // stride + 1
    OH2 = (OH1 + 2 * pad - k) // stride + 1
    OW2 = (OW1 + 2 * pad - k) // stride + 1
    ks = jax.random.split(key, 12)
    rnd = lambda kk, shape: 0.05 * jax.random.normal(kk, shape, jnp.float32)
    feat_dim = OH2 * OW2 * hidden
    return dict(
        w1=rnd(ks[0], (k, k, nc, hidden)),       c1b=rnd(ks[1], (hidden,)),
        w2=rnd(ks[2], (k, k, hidden, hidden)),   c2b=rnd(ks[3], (hidden,)),
        wfc=rnd(ks[4], (feat_dim, 2 * action_dim)), bfc=rnd(ks[5], (2 * action_dim,)),
        ws1=rnd(ks[6], (state_dim, hidden)),     bs1=rnd(ks[7], (hidden,)),
        ws2=rnd(ks[8], (hidden, hidden)),        bs2=rnd(ks[9], (hidden,)),
        ws3=rnd(ks[10], (hidden, 2 * action_dim)), bs3=rnd(ks[11], (2 * action_dim,)),
        dims=dict(OH1=OH1, OW1=OW1, OH2=OH2, OW2=OW2, H=H, W=W, nc=nc,
                  hidden=hidden, k=k, stride=stride, pad=pad),
    )


def prepare_kernel_params(raw, B, action_dim, state_dim):
    d = raw["dims"]
    H, W, nc, hidden = d["H"], d["W"], d["nc"], d["hidden"]
    OH1, OW1, OH2, OW2 = d["OH1"], d["OW1"], d["OH2"], d["OW2"]
    k, stride, pad = d["k"], d["stride"], d["pad"]
    A = action_dim
    bf16 = jnp.bfloat16

    # conv1: row-tap selections + column-folded weights; each K block padded to a
    # 128-lane multiple so the in-kernel tap concat stays lane-aligned.
    s1 = _sel_rows(B, H, OH1, k, stride, pad)                        # (k, B*OH1, B*H)
    f1 = _fold_cols(np.asarray(raw["w1"]), W, OW1, stride, pad)      # (k, W*nc, OW1*hid)
    xw = ((W * nc + 127) // 128) * 128
    r1 = np.zeros((k * xw, OW1 * hidden), np.float32)
    for i in range(k):
        r1[i * xw: i * xw + W * nc] = f1[i]

    # conv2 / fc: intermediate widths must be lane-aligned for the cheap concats.
    assert (OW1 * hidden) % 128 == 0 and (OW2 * hidden) % 128 == 0
    s2 = _sel_rows(B, OH1, OH2, k, stride, pad)                      # (k, B*OH2, B*OH1)
    f2 = _fold_cols(np.asarray(raw["w2"]), OW1, OW2, stride, pad)    # (k, OW1*h, OW2*h)
    r2 = np.concatenate([f2[i] for i in range(k)], axis=0)           # (k*OW1*h, OW2*h)

    # flatten: per-output-row batch selection (B rows each).
    s3 = np.zeros((OH2, B, B * OH2), np.float32)
    for r in range(OH2):
        for b in range(B):
            s3[r, b, b * OH2 + r] = 1.0

    # state-MLP weights packed into one slab with 16-row-aligned blocks:
    # [ws1_state | pad | ws1_lidar | ws2 | ws3(padded to `hidden` cols)]
    ws1 = np.asarray(raw["ws1"])
    lidar_dim = ws1.shape[0] - state_dim
    o_l = _ru16(state_dim)
    o_2 = _ru16(o_l + lidar_dim)
    o_3 = o_2 + hidden
    wst = np.zeros((o_3 + hidden, hidden), np.float32)
    wst[:state_dim] = ws1[:state_dim]
    wst[o_l:o_l + lidar_dim] = ws1[state_dim:]
    wst[o_2:o_2 + hidden] = np.asarray(raw["ws2"])
    wst[o_3:o_3 + hidden, :2 * A] = np.asarray(raw["ws3"])

    # all biases in one small f32 slab (one DMA).
    bw = max(OW1 * hidden, OW2 * hidden, 128)
    biases = np.zeros((6, bw), np.float32)
    biases[0, :OW1 * hidden] = np.tile(np.asarray(raw["c1b"]), OW1)
    biases[1, :OW2 * hidden] = np.tile(np.asarray(raw["c2b"]), OW2)
    biases[2, :hidden] = np.asarray(raw["bs1"])
    biases[3, :hidden] = np.asarray(raw["bs2"])
    biases[4, :2 * A] = np.asarray(raw["bfc"])
    biases[5, :2 * A] = np.asarray(raw["bs3"])

    # MXU operands in bf16 (exact for the 0/1 selection matrices); biases stay f32.
    return dict(
        s1=jnp.asarray(s1, bf16), r1=jnp.asarray(r1, bf16),
        s2=jnp.asarray(s2, bf16), r2=jnp.asarray(r2, bf16),
        s3=jnp.asarray(s3, bf16),
        w_img=jnp.asarray(np.asarray(raw["wfc"]), bf16),     # rows in NHWC (oh,ow,c) order
        w_state=jnp.asarray(wst, bf16),
        biases=jnp.asarray(biases, jnp.float32),
    )


# ----------------------------------------------------------------------------
# Forward wrapper: single fused pallas_call
# ----------------------------------------------------------------------------
def bnn_agent_forward(params, state, lidar, img, action_expert, eps, rand_mask,
                      min_std=0.1, max_std=1.0):
    B, C, H, W = img.shape
    A = action_expert.shape[-1]
    k = params["s1"].shape[0]
    xw = params["r1"].shape[0] // k          # lane-padded conv1 K-block width

    # Only layout plumbing left outside the kernel: NCHW -> NHWC-flat image (+ lane
    # pad).  allow_input_fusion below lets XLA fuse this producer into the operand.
    x1 = jnp.transpose(img, (0, 2, 3, 1)).reshape(B * H, W * C)
    if xw > W * C:
        x1 = jnp.pad(x1, ((0, 0), (0, xw - W * C)))

    operands = (x1, state, lidar, eps, rand_mask, action_expert,
                params["s1"], params["r1"], params["s2"], params["r2"], params["s3"],
                params["w_img"], params["w_state"], params["biases"])

    # Advisory cost estimate for XLA's scheduler.
    mm = lambda m, kk, n: 2 * m * kk * n
    hid = params["w_state"].shape[1]
    flops = (k * mm(params["s1"].shape[1], params["s1"].shape[2], xw)
             + mm(params["s1"].shape[1], params["r1"].shape[0], params["r1"].shape[1])
             + k * mm(params["s2"].shape[1], params["s2"].shape[2], params["r1"].shape[1])
             + mm(params["s2"].shape[1], params["r2"].shape[0], params["r2"].shape[1])
             + params["s3"].shape[0] * mm(B, params["s3"].shape[2], params["r2"].shape[1])
             + mm(B, params["w_img"].shape[0], params["w_img"].shape[1])
             + mm(B, state.shape[1], hid) + mm(B, lidar.shape[1], hid)
             + 2 * mm(B, hid, hid))
    bytes_accessed = sum(int(o.size) * o.dtype.itemsize for o in operands) + (B * A + 1) * 4
    cost = pl.CostEstimate(flops=int(flops), transcendentals=4 * B * A,
                           bytes_accessed=int(bytes_accessed))

    vmem = pl.BlockSpec(memory_space=pltpu.MemorySpace.VMEM)
    action, loss = pl.pallas_call(
        functools.partial(_bnn_fused_kernel, min_std=min_std, max_std=max_std),
        out_shape=(jax.ShapeDtypeStruct((B, A), jnp.float32),
                   jax.ShapeDtypeStruct((1, 1), jnp.float32)),
        in_specs=[vmem] * len(operands),
        out_specs=(vmem, vmem),
        compiler_params=pltpu.CompilerParams(
            allow_input_fusion=[True] + [False] * (len(operands) - 1)),
        cost_estimate=cost,
    )(*operands)
    return action, loss[0, 0]


# ----------------------------------------------------------------------------
# Pure-JAX reference (same synthesized architecture) for a correctness cross-check
# ----------------------------------------------------------------------------
def _reference_forward(raw, state, lidar, img, action_expert, eps_img, eps_state,
                       rand_mask, min_std=0.1, max_std=1.0):
    hp = jax.lax.Precision.HIGHEST
    A = action_expert.shape[-1]
    B = state.shape[0]
    x = jnp.transpose(img, (0, 2, 3, 1))

    def conv(x, w, b):
        y = jax.lax.conv_general_dilated(
            x, w, window_strides=(2, 2), padding=((1, 1), (1, 1)),
            dimension_numbers=("NHWC", "HWIO", "NHWC"), precision=hp)
        return jnp.maximum(y + b[None, None, None, :], 0.0)

    h = conv(x, raw["w1"], raw["c1b"])
    h = conv(h, raw["w2"], raw["c2b"])
    feat = h.reshape(B, -1)
    z_img = jnp.dot(feat, raw["wfc"], precision=hp) + raw["bfc"]
    mu_img = z_img[:, :A]
    std_img = min_std + (max_std - min_std) * jax.nn.sigmoid(z_img[:, A:])

    st = jnp.concatenate([state, lidar], axis=-1)
    hh = jnp.maximum(jnp.dot(st, raw["ws1"], precision=hp) + raw["bs1"], 0.0)
    hh = jnp.maximum(jnp.dot(hh, raw["ws2"], precision=hp) + raw["bs2"], 0.0)
    z_state = jnp.dot(hh, raw["ws3"], precision=hp) + raw["bs3"]
    mu_state = z_state[:, :A]
    std_state = min_std + (max_std - min_std) * jax.nn.sigmoid(z_state[:, A:])

    act_img = mu_img + std_img * eps_img
    act_state = mu_state + std_state * eps_state
    action = jnp.where(rand_mask > 0.5, act_img, act_state)
    loss = jnp.mean((action - action_expert) ** 2)
    return action, loss


if __name__ == "__main__":
    B, action_dim, hidden = 2, 2, 32
    nc, H, W = 5, 16, 16
    state_dim, lidar_dim = 35, 240

    root = jax.random.PRNGKey(0)
    kp, kst, kl, ki, ke, keps, km = jax.random.split(root, 7)

    raw = init_params(kp, hidden=hidden, action_dim=action_dim, nc=nc, H=H, W=W,
                      state_dim=state_dim + lidar_dim)
    params = prepare_kernel_params(raw, B, action_dim, state_dim)

    state = jax.random.normal(kst, (B, state_dim), jnp.float32)
    lidar = jax.random.normal(kl, (B, lidar_dim), jnp.float32)
    img = jax.random.normal(ki, (B, nc, H, W), jnp.float32)
    action_expert = jax.random.normal(ke, (B, action_dim), jnp.float32)

    # randomness for Normal.rsample (cols [:A] = image head, [A:] = state head) and the
    # torch.rand(batch,1) > 0.5 mixing mask, drawn host-side so the kernel is deterministic.
    eps = jax.random.normal(keps, (B, 2 * action_dim), jnp.float32)
    rand_mask = jnp.tile((jax.random.uniform(km, (B, 1)) > 0.5).astype(jnp.float32),
                         (1, action_dim))

    fwd = jax.jit(bnn_agent_forward)
    action, policy_loss = fwd(params, state, lidar, img, action_expert, eps, rand_mask)
    jax.block_until_ready((action, policy_loss))
    assert action.shape == (B, action_dim) and policy_loss.shape == ()

    # cross-check the fused (bf16-MXU / f32-accumulate) kernel against the f32 XLA reference
    ref_action, ref_loss = _reference_forward(
        raw, state, lidar, img, action_expert,
        eps[:, :action_dim], eps[:, action_dim:], rand_mask)
    assert float(jnp.max(jnp.abs(action - ref_action))) < 4e-2
    assert float(jnp.abs(policy_loss - ref_loss)) < 4e-2 * (1.0 + float(ref_loss))

    print("KERNEL_OK")
</pallas_src>

<mosaic_0001>
module attributes {stable_mosaic.version = 11 : i64} {
  func.func @_bnn_fused_kernel(%arg0: memref<32x128xf32, #tpu.memory_space<vmem>>, %arg1: memref<2x35xf32, #tpu.memory_space<vmem>>, %arg2: memref<2x240xf32, #tpu.memory_space<vmem>>, %arg3: memref<2x4xf32, #tpu.memory_space<vmem>>, %arg4: memref<2x2xf32, #tpu.memory_space<vmem>>, %arg5: memref<2x2xf32, #tpu.memory_space<vmem>>, %arg6: memref<3x16x32xbf16, #tpu.memory_space<vmem>>, %arg7: memref<384x256xbf16, #tpu.memory_space<vmem>>, %arg8: memref<3x8x16xbf16, #tpu.memory_space<vmem>>, %arg9: memref<768x128xbf16, #tpu.memory_space<vmem>>, %arg10: memref<4x2x8xbf16, #tpu.memory_space<vmem>>, %arg11: memref<512x4xbf16, #tpu.memory_space<vmem>>, %arg12: memref<352x32xbf16, #tpu.memory_space<vmem>>, %arg13: memref<6x256xf32, #tpu.memory_space<vmem>>, %arg14: memref<2x2xf32, #tpu.memory_space<vmem>>, %arg15: memref<1x1xf32, #tpu.memory_space<vmem>>) attributes {dimension_semantics = [], scalar_prefetch = 0 : i64, scratch_operands = 0 : i64, tpu.core_type = #tpu.core_type<tc>} {
    %c0 = arith.constant 0 : index
    %c0_0 = arith.constant 0 : index
    %0 = vector.load %arg0[%c0, %c0_0] : memref<32x128xf32, #tpu.memory_space<vmem>>, vector<32x128xf32>
    %1 = arith.truncf %0 : vector<32x128xf32> to vector<32x128xbf16>
    %c0_1 = arith.constant 0 : index
    %c0_2 = arith.constant 0 : index
    %c0_3 = arith.constant 0 : index
    %2 = vector.load %arg6[%c0_1, %c0_2, %c0_3] : memref<3x16x32xbf16, #tpu.memory_space<vmem>>, vector<1x16x32xbf16>
    %3 = vector.shape_cast %2 : vector<1x16x32xbf16> to vector<16x32xbf16>
    %cst = arith.constant dense<0.000000e+00> : vector<16x128xf32>
    %4 = tpu.matmul %3, %1, %cst {dimension_numbers = #tpu.dot_dimension_numbers<[1], [0], [0], [1], [0, 0, 1, 1], [], []>} : vector<16x32xbf16>, vector<32x128xbf16>, vector<16x128xf32> -> vector<16x128xf32>
    %c1 = arith.constant 1 : index
    %c0_4 = arith.constant 0 : index
    %c0_5 = arith.constant 0 : index
    %5 = vector.load %arg6[%c1, %c0_4, %c0_5] : memref<3x16x32xbf16, #tpu.memory_space<vmem>>, vector<1x16x32xbf16>
    %6 = vector.shape_cast %5 : vector<1x16x32xbf16> to vector<16x32xbf16>
    %cst_6 = arith.constant dense<0.000000e+00> : vector<16x128xf32>
    %7 = tpu.matmul %6, %1, %cst_6 {dimension_numbers = #tpu.dot_dimension_numbers<[1], [0], [0], [1], [0, 0, 1, 1], [], []>} : vector<16x32xbf16>, vector<32x128xbf16>, vector<16x128xf32> -> vector<16x128xf32>
    %c2 = arith.constant 2 : index
    %c0_7 = arith.constant 0 : index
    %c0_8 = arith.constant 0 : index
    %8 = vector.load %arg6[%c2, %c0_7, %c0_8] : memref<3x16x32xbf16, #tpu.memory_space<vmem>>, vector<1x16x32xbf16>
    %9 = vector.shape_cast %8 : vector<1x16x32xbf16> to vector<16x32xbf16>
    %cst_9 = arith.constant dense<0.000000e+00> : vector<16x128xf32>
    %10 = tpu.matmul %9, %1, %cst_9 {dimension_numbers = #tpu.dot_dimension_numbers<[1], [0], [0], [1], [0, 0, 1, 1], [], []>} : vector<16x32xbf16>, vector<32x128xbf16>, vector<16x128xf32> -> vector<16x128xf32>
    %11 = tpu.concatenate %4, %7, %10 in 1 : vector<16x128xf32>, vector<16x128xf32>, vector<16x128xf32> -> vector<16x384xf32>
    %12 = arith.truncf %11 : vector<16x384xf32> to vector<16x384xbf16>
    %c0_10 = arith.constant 0 : index
    %c0_11 = arith.constant 0 : index
    %13 = vector.load %arg7[%c0_10, %c0_11] : memref<384x256xbf16, #tpu.memory_space<vmem>>, vector<384x256xbf16>
    %cst_12 = arith.constant dense<0.000000e+00> : vector<16x256xf32>
    %14 = tpu.matmul %12, %13, %cst_12 {dimension_numbers = #tpu.dot_dimension_numbers<[1], [0], [0], [1], [0, 0, 1, 1], [], []>} : vector<16x384xbf16>, vector<384x256xbf16>, vector<16x256xf32> -> vector<16x256xf32>
    %c0_13 = arith.constant 0 : index
    %c0_14 = arith.constant 0 : index
    %15 = vector.load %arg13[%c0_13, %c0_14] : memref<6x256xf32, #tpu.memory_space<vmem>>, vector<1x256xf32>
    %16 = vector.broadcast %15 : vector<1x256xf32> to vector<16x256xf32>
    %17 = arith.addf %14, %16 : vector<16x256xf32>
    %cst_15 = arith.constant 0.000000e+00 : f32
    %18 = vector.broadcast %cst_15 : f32 to vector<16x256xf32>
    %19 = arith.maximumf %17, %18 : vector<16x256xf32>
    %20 = arith.truncf %19 : vector<16x256xf32> to vector<16x256xbf16>
    %c0_16 = arith.constant 0 : index
    %c0_17 = arith.constant 0 : index
    %c0_18 = arith.constant 0 : index
    %21 = vector.load %arg8[%c0_16, %c0_17, %c0_18] : memref<3x8x16xbf16, #tpu.memory_space<vmem>>, vector<1x8x16xbf16>
    %22 = vector.shape_cast %21 : vector<1x8x16xbf16> to vector<8x16xbf16>
    %cst_19 = arith.constant dense<0.000000e+00> : vector<8x256xf32>
    %23 = tpu.matmul %22, %20, %cst_19 {dimension_numbers = #tpu.dot_dimension_numbers<[1], [0], [0], [1], [0, 0, 1, 1], [], []>} : vector<8x16xbf16>, vector<16x256xbf16>, vector<8x256xf32> -> vector<8x256xf32>
    %c1_20 = arith.constant 1 : index
    %c0_21 = arith.constant 0 : index
    %c0_22 = arith.constant 0 : index
    %24 = vector.load %arg8[%c1_20, %c0_21, %c0_22] : memref<3x8x16xbf16, #tpu.memory_space<vmem>>, vector<1x8x16xbf16>
    %25 = vector.shape_cast %24 : vector<1x8x16xbf16> to vector<8x16xbf16>
    %cst_23 = arith.constant dense<0.000000e+00> : vector<8x256xf32>
    %26 = tpu.matmul %25, %20, %cst_23 {dimension_numbers = #tpu.dot_dimension_numbers<[1], [0], [0], [1], [0, 0, 1, 1], [], []>} : vector<8x16xbf16>, vector<16x256xbf16>, vector<8x256xf32> -> vector<8x256xf32>
    %c2_24 = arith.constant 2 : index
    %c0_25 = arith.constant 0 : index
    %c0_26 = arith.constant 0 : index
    %27 = vector.load %arg8[%c2_24, %c0_25, %c0_26] : memref<3x8x16xbf16, #tpu.memory_space<vmem>>, vector<1x8x16xbf16>
    %28 = vector.shape_cast %27 : vector<1x8x16xbf16> to vector<8x16xbf16>
    %cst_27 = arith.constant dense<0.000000e+00> : vector<8x256xf32>
    %29 = tpu.matmul %28, %20, %cst_27 {dimension_numbers = #tpu.dot_dimension_numbers<[1], [0], [0], [1], [0, 0, 1, 1], [], []>} : vector<8x16xbf16>, vector<16x256xbf16>, vector<8x256xf32> -> vector<8x256xf32>
    %30 = tpu.concatenate %23, %26, %29 in 1 : vector<8x256xf32>, vector<8x256xf32>, vector<8x256xf32> -> vector<8x768xf32>
    %31 = arith.truncf %30 : vector<8x768xf32> to vector<8x768xbf16>
    %c0_28 = arith.constant 0 : index
    %c0_29 = arith.constant 0 : index
    %32 = vector.load %arg9[%c0_28, %c0_29] : memref<768x128xbf16, #tpu.memory_space<vmem>>, vector<768x128xbf16>
    %cst_30 = arith.constant dense<0.000000e+00> : vector<8x128xf32>
    %33 = tpu.matmul %31, %32, %cst_30 {dimension_numbers = #tpu.dot_dimension_numbers<[1], [0], [0], [1], [0, 0, 1, 1], [], []>} : vector<8x768xbf16>, vector<768x128xbf16>, vector<8x128xf32> -> vector<8x128xf32>
    %c1_31 = arith.constant 1 : index
    %c0_32 = arith.constant 0 : index
    %34 = vector.load %arg13[%c1_31, %c0_32] : memref<6x256xf32, #tpu.memory_space<vmem>>, vector<1x128xf32>
    %35 = vector.broadcast %34 : vector<1x128xf32> to vector<8x128xf32>
    %36 = arith.addf %33, %35 : vector<8x128xf32>
    %cst_33 = arith.constant 0.000000e+00 : f32
    %37 = vector.broadcast %cst_33 : f32 to vector<8x128xf32>
    %38 = arith.maximumf %36, %37 : vector<8x128xf32>
    %39 = arith.truncf %38 : vector<8x128xf32> to vector<8x128xbf16>
    %c0_34 = arith.constant 0 : index
    %c0_35 = arith.constant 0 : index
    %c0_36 = arith.constant 0 : index
    %40 = vector.load %arg10[%c0_34, %c0_35, %c0_36] : memref<4x2x8xbf16, #tpu.memory_space<vmem>>, vector<1x2x8xbf16>
    %41 = vector.shape_cast %40 : vector<1x2x8xbf16> to vector<2x8xbf16>
    %cst_37 = arith.constant dense<0.000000e+00> : vector<2x128xf32>
    %42 = tpu.matmul %41, %39, %cst_37 {dimension_numbers = #tpu.dot_dimension_numbers<[1], [0], [0], [1], [0, 0, 1, 1], [], []>} : vector<2x8xbf16>, vector<8x128xbf16>, vector<2x128xf32> -> vector<2x128xf32>
    %c1_38 = arith.constant 1 : index
    %c0_39 = arith.constant 0 : index
    %c0_40 = arith.constant 0 : index
    %43 = vector.load %arg10[%c1_38, %c0_39, %c0_40] : memref<4x2x8xbf16, #tpu.memory_space<vmem>>, vector<1x2x8xbf16>
    %44 = vector.shape_cast %43 : vector<1x2x8xbf16> to vector<2x8xbf16>
    %cst_41 = arith.constant dense<0.000000e+00> : vector<2x128xf32>
    %45 = tpu.matmul %44, %39, %cst_41 {dimension_numbers = #tpu.dot_dimension_numbers<[1], [0], [0], [1], [0, 0, 1, 1], [], []>} : vector<2x8xbf16>, vector<8x128xbf16>, vector<2x128xf32> -> vector<2x128xf32>
    %c2_42 = arith.constant 2 : index
    %c0_43 = arith.constant 0 : index
    %c0_44 = arith.constant 0 : index
    %46 = vector.load %arg10[%c2_42, %c0_43, %c0_44] : memref<4x2x8xbf16, #tpu.memory_space<vmem>>, vector<1x2x8xbf16>
    %47 = vector.shape_cast %46 : vector<1x2x8xbf16> to vector<2x8xbf16>
    %cst_45 = arith.constant dense<0.000000e+00> : vector<2x128xf32>
    %48 = tpu.matmul %47, %39, %cst_45 {dimension_numbers = #tpu.dot_dimension_numbers<[1], [0], [0], [1], [0, 0, 1, 1], [], []>} : vector<2x8xbf16>, vector<8x128xbf16>, vector<2x128xf32> -> vector<2x128xf32>
    %c3 = arith.constant 3 : index
    %c0_46 = arith.constant 0 : index
    %c0_47 = arith.constant 0 : index
    %49 = vector.load %arg10[%c3, %c0_46, %c0_47] : memref<4x2x8xbf16, #tpu.memory_space<vmem>>, vector<1x2x8xbf16>
    %50 = vector.shape_cast %49 : vector<1x2x8xbf16> to vector<2x8xbf16>
    %cst_48 = arith.constant dense<0.000000e+00> : vector<2x128xf32>
    %51 = tpu.matmul %50, %39, %cst_48 {dimension_numbers = #tpu.dot_dimension_numbers<[1], [0], [0], [1], [0, 0, 1, 1], [], []>} : vector<2x8xbf16>, vector<8x128xbf16>, vector<2x128xf32> -> vector<2x128xf32>
    %52 = tpu.concatenate %42, %45, %48, %51 in 1 : vector<2x128xf32>, vector<2x128xf32>, vector<2x128xf32>, vector<2x128xf32> -> vector<2x512xf32>
    %53 = arith.truncf %52 : vector<2x512xf32> to vector<2x512xbf16>
    %c0_49 = arith.constant 0 : index
    %c0_50 = arith.constant 0 : index
    %54 = vector.load %arg11[%c0_49, %c0_50] : memref<512x4xbf16, #tpu.memory_space<vmem>>, vector<512x4xbf16>
    %cst_51 = arith.constant dense<0.000000e+00> : vector<2x4xf32>
    %55 = tpu.matmul %53, %54, %cst_51 {dimension_numbers = #tpu.dot_dimension_numbers<[1], [0], [0], [1], [0, 0, 1, 1], [], []>} : vector<2x512xbf16>, vector<512x4xbf16>, vector<2x4xf32> -> vector<2x4xf32>
    %c4 = arith.constant 4 : index
    %c0_52 = arith.constant 0 : index
    %56 = vector.load %arg13[%c4, %c0_52] : memref<6x256xf32, #tpu.memory_space<vmem>>, vector<1x4xf32>
    %57 = vector.broadcast %56 : vector<1x4xf32> to vector<2x4xf32>
    %58 = arith.addf %55, %57 : vector<2x4xf32>
    %59 = vector.extract_strided_slice %58 {offsets = [0, 0], sizes = [2, 2], strides = [1, 1]} : vector<2x4xf32> to vector<2x2xf32>
    %60 = vector.extract_strided_slice %58 {offsets = [0, 2], sizes = [2, 2], strides = [1, 1]} : vector<2x4xf32> to vector<2x2xf32>
    %61 = arith.negf %60 : vector<2x2xf32>
    %62 = math.exp %61 : vector<2x2xf32>
    %cst_53 = arith.constant 1.000000e+00 : f32
    %63 = vector.broadcast %cst_53 : f32 to vector<2x2xf32>
    %64 = arith.addf %63, %62 : vector<2x2xf32>
    %65 = arith.divf %63, %64 : vector<2x2xf32>
    %cst_54 = arith.constant 0.899999976 : f32
    %66 = vector.broadcast %cst_54 : f32 to vector<2x2xf32>
    %67 = arith.mulf %66, %65 : vector<2x2xf32>
    %cst_55 = arith.constant 1.000000e-01 : f32
    %68 = vector.broadcast %cst_55 : f32 to vector<2x2xf32>
    %69 = arith.addf %68, %67 : vector<2x2xf32>
    %c0_56 = arith.constant 0 : index
    %c0_57 = arith.constant 0 : index
    %70 = vector.load %arg1[%c0_56, %c0_57] : memref<2x35xf32, #tpu.memory_space<vmem>>, vector<2x35xf32>
    %71 = arith.truncf %70 : vector<2x35xf32> to vector<2x35xbf16>
    %c0_58 = arith.constant 0 : index
    %c0_59 = arith.constant 0 : index
    %72 = vector.load %arg2[%c0_58, %c0_59] : memref<2x240xf32, #tpu.memory_space<vmem>>, vector<2x240xf32>
    %73 = arith.truncf %72 : vector<2x240xf32> to vector<2x240xbf16>
    %c0_60 = arith.constant 0 : index
    %c0_61 = arith.constant 0 : index
    %74 = vector.load %arg12[%c0_60, %c0_61] : memref<352x32xbf16, #tpu.memory_space<vmem>>, vector<35x32xbf16>
    %cst_62 = arith.constant dense<0.000000e+00> : vector<2x32xf32>
    %75 = tpu.matmul %71, %74, %cst_62 {dimension_numbers = #tpu.dot_dimension_numbers<[1], [0], [0], [1], [0, 0, 1, 1], [], []>} : vector<2x35xbf16>, vector<35x32xbf16>, vector<2x32xf32> -> vector<2x32xf32>
    %c48 = arith.constant 48 : index
    %c0_63 = arith.constant 0 : index
    %76 = vector.load %arg12[%c48, %c0_63] : memref<352x32xbf16, #tpu.memory_space<vmem>>, vector<240x32xbf16>
    %cst_64 = arith.constant dense<0.000000e+00> : vector<2x32xf32>
    %77 = tpu.matmul %73, %76, %cst_64 {dimension_numbers = #tpu.dot_dimension_numbers<[1], [0], [0], [1], [0, 0, 1, 1], [], []>} : vector<2x240xbf16>, vector<240x32xbf16>, vector<2x32xf32> -> vector<2x32xf32>
    %78 = arith.addf %75, %77 : vector<2x32xf32>
    %c2_65 = arith.constant 2 : index
    %c0_66 = arith.constant 0 : index
    %79 = vector.load %arg13[%c2_65, %c0_66] : memref<6x256xf32, #tpu.memory_space<vmem>>, vector<1x32xf32>
    %80 = vector.broadcast %79 : vector<1x32xf32> to vector<2x32xf32>
    %81 = arith.addf %78, %80 : vector<2x32xf32>
    %cst_67 = arith.constant 0.000000e+00 : f32
    %82 = vector.broadcast %cst_67 : f32 to vector<2x32xf32>
    %83 = arith.maximumf %81, %82 : vector<2x32xf32>
    %84 = arith.truncf %83 : vector<2x32xf32> to vector<2x32xbf16>
    %c288 = arith.constant 288 : index
    %c0_68 = arith.constant 0 : index
    %85 = vector.load %arg12[%c288, %c0_68] : memref<352x32xbf16, #tpu.memory_space<vmem>>, vector<32x32xbf16>
    %cst_69 = arith.constant dense<0.000000e+00> : vector<2x32xf32>
    %86 = tpu.matmul %84, %85, %cst_69 {dimension_numbers = #tpu.dot_dimension_numbers<[1], [0], [0], [1], [0, 0, 1, 1], [], []>} : vector<2x32xbf16>, vector<32x32xbf16>, vector<2x32xf32> -> vector<2x32xf32>
    %c3_70 = arith.constant 3 : index
    %c0_71 = arith.constant 0 : index
    %87 = vector.load %arg13[%c3_70, %c0_71] : memref<6x256xf32, #tpu.memory_space<vmem>>, vector<1x32xf32>
    %88 = vector.broadcast %87 : vector<1x32xf32> to vector<2x32xf32>
    %89 = arith.addf %86, %88 : vector<2x32xf32>
    %cst_72 = arith.constant 0.000000e+00 : f32
    %90 = vector.broadcast %cst_72 : f32 to vector<2x32xf32>
    %91 = arith.maximumf %89, %90 : vector<2x32xf32>
    %92 = arith.truncf %91 : vector<2x32xf32> to vector<2x32xbf16>
    %c320 = arith.constant 320 : index
    %c0_73 = arith.constant 0 : index
    %93 = vector.load %arg12[%c320, %c0_73] : memref<352x32xbf16, #tpu.memory_space<vmem>>, vector<32x32xbf16>
    %cst_74 = arith.constant dense<0.000000e+00> : vector<2x32xf32>
    %94 = tpu.matmul %92, %93, %cst_74 {dimension_numbers = #tpu.dot_dimension_numbers<[1], [0], [0], [1], [0, 0, 1, 1], [], []>} : vector<2x32xbf16>, vector<32x32xbf16>, vector<2x32xf32> -> vector<2x32xf32>
    %95 = vector.extract_strided_slice %94 {offsets = [0, 0], sizes = [2, 4], strides = [1, 1]} : vector<2x32xf32> to vector<2x4xf32>
    %c5 = arith.constant 5 : index
    %c0_75 = arith.constant 0 : index
    %96 = vector.load %arg13[%c5, %c0_75] : memref<6x256xf32, #tpu.memory_space<vmem>>, vector<1x4xf32>
    %97 = vector.broadcast %96 : vector<1x4xf32> to vector<2x4xf32>
    %98 = arith.addf %95, %97 : vector<2x4xf32>
    %99 = vector.extract_strided_slice %98 {offsets = [0, 0], sizes = [2, 2], strides = [1, 1]} : vector<2x4xf32> to vector<2x2xf32>
    %100 = vector.extract_strided_slice %98 {offsets = [0, 2], sizes = [2, 2], strides = [1, 1]} : vector<2x4xf32> to vector<2x2xf32>
    %101 = arith.negf %100 : vector<2x2xf32>
    %102 = math.exp %101 : vector<2x2xf32>
    %cst_76 = arith.constant 1.000000e+00 : f32
    %103 = vector.broadcast %cst_76 : f32 to vector<2x2xf32>
    %104 = arith.addf %103, %102 : vector<2x2xf32>
    %105 = arith.divf %103, %104 : vector<2x2xf32>
    %cst_77 = arith.constant 0.899999976 : f32
    %106 = vector.broadcast %cst_77 : f32 to vector<2x2xf32>
    %107 = arith.mulf %106, %105 : vector<2x2xf32>
    %cst_78 = arith.constant 1.000000e-01 : f32
    %108 = vector.broadcast %cst_78 : f32 to vector<2x2xf32>
    %109 = arith.addf %108, %107 : vector<2x2xf32>
    %c0_79 = arith.constant 0 : index
    %c0_80 = arith.constant 0 : index
    %110 = vector.load %arg3[%c0_79, %c0_80] : memref<2x4xf32, #tpu.memory_space<vmem>>, vector<2x4xf32>
    %111 = vector.extract_strided_slice %110 {offsets = [0, 0], sizes = [2, 2], strides = [1, 1]} : vector<2x4xf32> to vector<2x2xf32>
    %112 = arith.mulf %69, %111 : vector<2x2xf32>
    %113 = arith.addf %59, %112 : vector<2x2xf32>
    %114 = vector.extract_strided_slice %110 {offsets = [0, 2], sizes = [2, 2], strides = [1, 1]} : vector<2x4xf32> to vector<2x2xf32>
    %115 = arith.mulf %109, %114 : vector<2x2xf32>
    %116 = arith.addf %99, %115 : vector<2x2xf32>
    %c0_81 = arith.constant 0 : index
    %c0_82 = arith.constant 0 : index
    %117 = vector.load %arg4[%c0_81, %c0_82] : memref<2x2xf32, #tpu.memory_space<vmem>>, vector<2x2xf32>
    %cst_83 = arith.constant 5.000000e-01 : f32
    %118 = vector.broadcast %cst_83 : f32 to vector<2x2xf32>
    %119 = arith.cmpf ogt, %117, %118 : vector<2x2xf32>
    %120 = arith.select %119, %113, %116 : vector<2x2xi1>, vector<2x2xf32>
    %c0_84 = arith.constant 0 : index
    %c0_85 = arith.constant 0 : index
    %121 = vector.load %arg14[%c0_84, %c0_85] : memref<2x2xf32, #tpu.memory_space<vmem>>, vector<2x2xf32>
    tpu.vector_store %arg14[%c0_84, %c0_85], %120 {strides = array<i32>} : memref<2x2xf32, #tpu.memory_space<vmem>>, vector<2x2xf32>,
    %c0_86 = arith.constant 0 : index
    %c0_87 = arith.constant 0 : index
    %122 = vector.load %arg5[%c0_86, %c0_87] : memref<2x2xf32, #tpu.memory_space<vmem>>, vector<2x2xf32>
    %123 = arith.subf %120, %122 : vector<2x2xf32>
    %124 = arith.mulf %123, %123 : vector<2x2xf32>
    %125 = vector.shape_cast %124 : vector<2x2xf32> to vector<1x2x2xf32>
    %cst_88 = arith.constant dense<0.000000e+00> : vector<1xf32>
    %126 = vector.multi_reduction <add>, %125, %cst_88 [1, 2] : vector<1x2x2xf32> to vector<1xf32>
    %127 = vector.shape_cast %126 : vector<1xf32> to vector<1x1x1xf32>
    %128 = vector.extract %127[0, 0, 0] : f32 from vector<1x1x1xf32>
    %129 = vector.broadcast %128 : f32 to vector<1x1xf32>
    %cst_89 = arith.constant 2.500000e-01 : f32
    %130 = vector.broadcast %cst_89 : f32 to vector<1x1xf32>
    %131 = arith.mulf %129, %130 : vector<1x1xf32>
    %c0_90 = arith.constant 0 : index
    %c0_91 = arith.constant 0 : index
    %132 = vector.load %arg15[%c0_90, %c0_91] : memref<1x1xf32, #tpu.memory_space<vmem>>, vector<1x1xf32>
    tpu.vector_store %arg15[%c0_90, %c0_91], %131 {strides = array<i32>} : memref<1x1xf32, #tpu.memory_space<vmem>>, vector<1x1xf32>,
    return
  }
}

</mosaic_0001>

<llo_original>
// kernel: bnn_agent_forward.2
$region0: #{bnn_agent_forward.2}
  #allocation0 [shape = 'u32[]', space=smem, size = 0x4, offset = 0x4, fixed_abs, tag = 'smem constant byte address 0x4 - core index']
  #allocation1 [shape = 'u32[144,128]{1,0:T(1,128)}', space=vmem, size = 0x12000, scoped, tag = 'internal scratch']
  #allocation2 [shape = 'u32[2048]{0}', space=vmem, size = 0x2000, scoped, tag = 'scoped memory for bnn_agent_forward.2']
  #allocation3 [shape = 'u32[2048]{0}', space=vmem, size = 0x2000, scoped, tag = 'scoped memory for bnn_agent_forward.2']
  #allocation4 [shape = 'u32[2048]{0}', space=vmem, size = 0x2000, scoped, tag = 'scoped memory for bnn_agent_forward.2']
  #allocation5 [shape = 'u32[2048]{0}', space=vmem, size = 0x2000, scoped, tag = 'scoped memory for bnn_agent_forward.2']
  #allocation6 [shape = 'u32[2048]{0}', space=vmem, size = 0x2000, scoped, tag = 'scoped memory for bnn_agent_forward.2']
  %s0 = inlined_call_operand.vmem [shape: f32[2,35], index: 0, kind: input, shape index: {}]
  %s1 = inlined_call_operand.vmem [shape: f32[2,240], index: 1, kind: input, shape index: {}]
  %s2 = inlined_call_operand.vmem [shape: f32[2,4], index: 2, kind: input, shape index: {}]
  %s3 = inlined_call_operand.vmem [shape: f32[2,2], index: 3, kind: input, shape index: {}]
  %s4 = inlined_call_operand.vmem [shape: f32[2,2], index: 4, kind: input, shape index: {}]
  %s5 = inlined_call_operand.vmem [shape: bf16[3,16,32], index: 5, kind: input, shape index: {}]
  %s6 = inlined_call_operand.vmem [shape: bf16[384,256], index: 6, kind: input, shape index: {}]
  %s7 = inlined_call_operand.vmem [shape: bf16[3,8,16], index: 7, kind: input, shape index: {}]
  %s8 = inlined_call_operand.vmem [shape: bf16[768,128], index: 8, kind: input, shape index: {}]
  %s9 = inlined_call_operand.vmem [shape: bf16[4,2,8], index: 9, kind: input, shape index: {}]
  %s10 = inlined_call_operand.vmem [shape: bf16[512,4], index: 10, kind: input, shape index: {}]
  %s11 = inlined_call_operand.vmem [shape: bf16[352,32], index: 11, kind: input, shape index: {}]
  %s12 = inlined_call_operand.vmem [shape: f32[6,256], index: 12, kind: input, shape index: {}]
  %s13 = inlined_call_operand.vmem [shape: f32[32,80], index: 13, kind: input, shape index: {}]
  %s14 = inlined_call_operand.<no memory space> [shape: f32[], index: 14, kind: input, shape index: {}]
  %s15 = inlined_call_operand.hbm [shape: f32[2,2], index: 15, kind: output, shape index: {0}]
  %s16 = inlined_call_operand.hbm [shape: f32[1,1], index: 16, kind: output, shape index: {1}]
  %17 = xla_tuple %s15, %s16
  %s18 = sld [smem:[#allocation0]]
  $region74: #{bnn_agent_forward.2} parent=0
    _
  %s20 = ssub.s32 1, %s18
  %s21 = scalar_select 0, %s20, %s18
  %v22 = vstv %s14
  $region1: #{bnn_agent_forward.2} parent=0
    #allocation7 [shape = 'u8[1024]{0}', space=vmem, size = 0x400, scoped, tag = 'output window, operand 0, single buffered']
    #allocation8 [shape = 's32[1]{0}', space=sflag, size = 0x4, scoped, tag = 'scoped memory for bnn_agent_forward.2']
    #allocation9 [shape = 'u8[512]{0}', space=vmem, size = 0x400, scoped, tag = 'output window, operand 1, single buffered']
    #allocation10 [shape = 's32[1]{0}', space=sflag, size = 0x4, scoped, tag = 'scoped memory for bnn_agent_forward.2']
    #allocation11 [shape = 'u8[16384]{0}', space=vmem, size = 0x4000, dematerialized = true, scoped, tag = 'FusionAdapter Buffer %fusion.1 = f32[32,128]{1,0:T(8,128)} fusion(%param_13.1, %param_14), kind=kLoop, calls=%fused_computation.1.clone, metadata={op_name="jit(bnn_agent_forward)/jit(_pad)/pad" stack_frame_id=8}']
    %23 = vsyncpa [#allocation8], 0
    %24 = vsyncpa [#allocation10], 0
    // Predicated region
    $region2: #{bnn_agent_forward.2} parent=1 // pred_check
      _
    $region3: #{bnn_agent_forward.2} parent=1 // pred_check_branch
      %26 = sbr.rel (0) target = $region5
    $region4: #{bnn_agent_forward.2} parent=1 // pred_region
      _
    $region5: #{bnn_agent_forward.2} parent=1 // pred_fallthru
      _
    // Predicated region
    $region6: #{bnn_agent_forward.2} parent=1 // pred_check
      _
    $region7: #{bnn_agent_forward.2} parent=1 // pred_check_branch
      %28 = sbr.rel (0) target = $region9
    $region8: #{bnn_agent_forward.2} parent=1 // pred_region
      _
    $region9: #{bnn_agent_forward.2} parent=1 // pred_fallthru
      _
    // Predicated region
    $region10: #{bnn_agent_forward.2} parent=1 // pred_check
      _
    $region11: #{bnn_agent_forward.2} parent=1 // pred_check_branch
      %30 = sbr.rel (0) target = $region13
    $region12: #{bnn_agent_forward.2} parent=1 // pred_region
      _
    $region13: #{bnn_agent_forward.2} parent=1 // pred_fallthru
      _
    // Predicated region
    $region14: #{bnn_agent_forward.2} parent=1 // pred_check
      _
    $region15: #{bnn_agent_forward.2} parent=1 // pred_check_branch
      %32 = sbr.rel (0) target = $region17
    $region16: #{bnn_agent_forward.2} parent=1 // pred_region
      _
    $region17: #{bnn_agent_forward.2} parent=1 // pred_fallthru
      _
    // Predicated region
    $region18: #{bnn_agent_forward.2} parent=1 // pred_check
      _
    $region19: #{bnn_agent_forward.2} parent=1 // pred_check_branch
      %34 = sbr.rel (0) target = $region21
    $region20: #{bnn_agent_forward.2} parent=1 // pred_region
      _
    $region21: #{bnn_agent_forward.2} parent=1 // pred_fallthru
      _
    // Predicated region
    $region22: #{bnn_agent_forward.2} parent=1 // pred_check
      _
    $region23: #{bnn_agent_forward.2} parent=1 // pred_check_branch
      %36 = sbr.rel (0) target = $region25
    $region24: #{bnn_agent_forward.2} parent=1 // pred_region
      _
    $region25: #{bnn_agent_forward.2} parent=1 // pred_fallthru
      _
    // Predicated region
    $region26: #{bnn_agent_forward.2} parent=1 // pred_check
      _
    $region27: #{bnn_agent_forward.2} parent=1 // pred_check_branch
      %38 = sbr.rel (0) target = $region29
    $region28: #{bnn_agent_forward.2} parent=1 // pred_region
      _
    $region29: #{bnn_agent_forward.2} parent=1 // pred_fallthru
      _
    // Predicated region
    $region30: #{bnn_agent_forward.2} parent=1 // pred_check
      _
    $region31: #{bnn_agent_forward.2} parent=1 // pred_check_branch
      %40 = sbr.rel (0) target = $region33
    $region32: #{bnn_agent_forward.2} parent=1 // pred_region
      _
    $region33: #{bnn_agent_forward.2} parent=1 // pred_fallthru
      _
    // Predicated region
    $region34: #{bnn_agent_forward.2} parent=1 // pred_check
      _
    $region35: #{bnn_agent_forward.2} parent=1 // pred_check_branch
      %42 = sbr.rel (0) target = $region37
    $region36: #{bnn_agent_forward.2} parent=1 // pred_region
      _
    $region37: #{bnn_agent_forward.2} parent=1 // pred_fallthru
      _
    // Predicated region
    $region38: #{bnn_agent_forward.2} parent=1 // pred_check
      _
    $region39: #{bnn_agent_forward.2} parent=1 // pred_check_branch
      %44 = sbr.rel (0) target = $region41
    $region40: #{bnn_agent_forward.2} parent=1 // pred_region
      _
    $region41: #{bnn_agent_forward.2} parent=1 // pred_fallthru
      _
    // Predicated region
    $region42: #{bnn_agent_forward.2} parent=1 // pred_check
      _
    $region43: #{bnn_agent_forward.2} parent=1 // pred_check_branch
      %46 = sbr.rel (0) target = $region45
    $region44: #{bnn_agent_forward.2} parent=1 // pred_region
      _
    $region45: #{bnn_agent_forward.2} parent=1 // pred_fallthru
      _
    // Predicated region
    $region46: #{bnn_agent_forward.2} parent=1 // pred_check
      _
    $region47: #{bnn_agent_forward.2} parent=1 // pred_check_branch
      %48 = sbr.rel (0) target = $region49
    $region48: #{bnn_agent_forward.2} parent=1 // pred_region
      _
    $region49: #{bnn_agent_forward.2} parent=1 // pred_fallthru
      _
    // Predicated region
    $region50: #{bnn_agent_forward.2} parent=1 // pred_check
      _
    $region51: #{bnn_agent_forward.2} parent=1 // pred_check_branch
      %50 = sbr.rel (0) target = $region53
    $region52: #{bnn_agent_forward.2} parent=1 // pred_region
      _
    $region53: #{bnn_agent_forward.2} parent=1 // pred_fallthru
      _
    // Predicated region
    $region54: #{bnn_agent_forward.2} parent=1 // pred_check
      _
    $region55: #{bnn_agent_forward.2} parent=1 // pred_check_branch
      %52 = sbr.rel (0) target = $region57
    $region56: #{bnn_agent_forward.2} parent=1 // pred_region
      _
    $region57: #{bnn_agent_forward.2} parent=1 // pred_fallthru
      _
    %v53 = vld [vmem:[%s13] sm:$0xff]
    %v54 = vlaneseq
    %v55 = vand.u32 %v54, 127
    %vm57 = vcmp.lt.s32.totalorder %v55, 80
    %v58 = vsel %vm57, %v53, %v22
    %s60 = ssub.s32 256, 1
    %61 = vst [vmem:[#allocation11] sm:%s60] %v58
    %s62 = scalar_lea.vmem %s13, 8
    %v63 = vld [vmem:[%s62] sm:$0xff]
    %v64 = vlaneseq
    %v65 = vand.u32 %v64, 127
    %vm67 = vcmp.lt.s32.totalorder %v65, 80
    %v68 = vsel %vm67, %v63, %v22
    %s69 = scalar_lea.vmem [#allocation11], 8
    %s71 = ssub.s32 256, 1
    %72 = vst [vmem:[%s69] sm:%s71] %v68
    %s73 = scalar_lea.vmem %s13, 16
    %v74 = vld [vmem:[%s73] sm:$0xff]
    %v75 = vlaneseq
    %v76 = vand.u32 %v75, 127
    %vm78 = vcmp.lt.s32.totalorder %v76, 80
    %v79 = vsel %vm78, %v74, %v22
    %s80 = scalar_lea.vmem [#allocation11], 16
    %s82 = ssub.s32 256, 1
    %83 = vst [vmem:[%s80] sm:%s82] %v79
    %s84 = scalar_lea.vmem %s13, 24
    %v85 = vld [vmem:[%s84] sm:$0xff]
    %v86 = vlaneseq
    %v87 = vand.u32 %v86, 127
    %vm89 = vcmp.lt.s32.totalorder %v87, 80
    %v90 = vsel %vm89, %v85, %v22
    %s91 = scalar_lea.vmem [#allocation11], 24
    %s93 = ssub.s32 256, 1
    %94 = vst [vmem:[%s91] sm:%s93] %v90
    %v96 = vld [vmem:[#allocation11] sm:$0xff]
    %v97 = vld [vmem:[#allocation11 + $0x8] sm:$0xff]
    %v98 = vld [vmem:[#allocation11 + $0x10] sm:$0xff]
    %v99 = vld [vmem:[#allocation11 + $0x18] sm:$0xff]
    %v100 = vpack.c.bf16 %v97, %v96
    %v101 = vpack.c.bf16 %v99, %v98
    %v102 = vld [vmem:[%s5] sm:$0xf]
    %v103 = vld [vmem:[%s5 + $0x4] sm:$0xf]
    %v106 = vunpack.c.l.b16 %v102
    %v107 = vunpack.c.l.b16 %v103
    %v108 = vpack.c.b16 %v107, %v106
    %vm109 = vcmask 261120
    %v111 = vsel %vm109, %v108, 0
    %113 = vmatprep.subr.bf16.mxu0 0
    %114 = vmatpush1.bf16.msra.mxu0 0
    %115 = vmatprep.subr.bf16.mxu0 0
    %116 = vmatpush1.bf16.msra.mxu0 0
    %117 = vmatprep.subr.bf16.mxu0 0
    %118 = vmatpush1.bf16.msra.mxu0 0
    %119 = vmatprep.subr.bf16.mxu0 0
    %120 = vmatpush1.bf16.msra.mxu0 0
    %121 = vmatprep.subr.bf16.mxu0 0
    %122 = vmatpush1.bf16.msra.mxu0 0
    %123 = vmatprep.subr.bf16.mxu0 0
    %124 = vmatpush1.bf16.msra.mxu0 0
    %125 = vmatprep.subr.bf16.mxu0 0
    %126 = vmatpush1.bf16.msra.mxu0 %v101
    %127 = vmatprep.subr.bf16.mxu0 0
    %128 = vmatpush1.bf16.msra.mxu0 %v100
    %129 = vmatprep.subr.bf16.mxu0 0
    %130 = vmatpush2.bf16.msra.mxu0 0
    %131 = vmatprep.subr.bf16.mxu0 0
    %132 = vmatpush2.bf16.msra.mxu0 0
    %133 = vmatprep.subr.bf16.mxu0 0
    %134 = vmatpush2.bf16.msra.mxu0 0
    %135 = vmatprep.subr.bf16.mxu0 0
    %136 = vmatpush2.bf16.msra.mxu0 0
    %137 = vmatprep.subr.bf16.mxu0 0
    %138 = vmatpush2.bf16.msra.mxu0 0
    %139 = vmatprep.subr.bf16.mxu0 0
    %140 = vmatpush2.bf16.msra.mxu0 0
    %141 = vmatprep.subr.bf16.mxu0 0
    %142 = vmatpush2.bf16.msra.mxu0 0
    %143 = vmatprep.subr.bf16.mxu0 0
    %144 = vmatpush2.bf16.msra.mxu0 0
    %145 = vmatprep.mubr.bf16.mxu0 0
    %146 = vmatmul.mubr.bf16.gmra.mxu0 %v111
    %v147 = vpop.f32.mrf.mxu0
    %v148 = vadd.f32 0.0, %v147
    %v149 = vpop.f32.mrf.mxu0
    %v150 = vpop.f32.mrf.mxu0
    %v151 = vadd.f32 0.0, %v150
    %v152 = vpop.f32.mrf.mxu0
    %153 = vdwg.mxu0
    %s154 = scalar_lea.vmem %s5, 8
    %v155 = vld [vmem:[%s154] sm:$0xf]
    %v156 = vld [vmem:[%s154 + $0x4] sm:$0xf]
    %v159 = vunpack.c.l.b16 %v155
    %v160 = vunpack.c.l.b16 %v156
    %v161 = vpack.c.b16 %v160, %v159
    %v163 = vsel %vm109, %v161, 0
    %165 = vmatprep.subr.bf16.mxu0 0
    %166 = vmatpush1.bf16.msra.mxu0 0
    %167 = vmatprep.subr.bf16.mxu0 0
    %168 = vmatpush1.bf16.msra.mxu0 0
    %169 = vmatprep.subr.bf16.mxu0 0
    %170 = vmatpush1.bf16.msra.mxu0 0
    %171 = vmatprep.subr.bf16.mxu0 0
    %172 = vmatpush1.bf16.msra.mxu0 0
    %173 = vmatprep.subr.bf16.mxu0 0
    %174 = vmatpush1.bf16.msra.mxu0 0
    %175 = vmatprep.subr.bf16.mxu0 0
    %176 = vmatpush1.bf16.msra.mxu0 0
    %177 = vmatprep.subr.bf16.mxu0 0
    %178 = vmatpush1.bf16.msra.mxu0 %v101
    %179 = vmatprep.subr.bf16.mxu0 0
    %180 = vmatpush1.bf16.msra.mxu0 %v100
    %181 = vmatprep.subr.bf16.mxu0 0
    %182 = vmatpush2.bf16.msra.mxu0 0
    %183 = vmatprep.subr.bf16.mxu0 0
    %184 = vmatpush2.bf16.msra.mxu0 0
    %185 = vmatprep.subr.bf16.mxu0 0
    %186 = vmatpush2.bf16.msra.mxu0 0
    %187 = vmatprep.subr.bf16.mxu0 0
    %188 = vmatpush2.bf16.msra.mxu0 0
    %189 = vmatprep.subr.bf16.mxu0 0
    %190 = vmatpush2.bf16.msra.mxu0 0
    %191 = vmatprep.subr.bf16.mxu0 0
    %192 = vmatpush2.bf16.msra.mxu0 0
    %193 = vmatprep.subr.bf16.mxu0 0
    %194 = vmatpush2.bf16.msra.mxu0 0
    %195 = vmatprep.subr.bf16.mxu0 0
    %196 = vmatpush2.bf16.msra.mxu0 0
    %197 = vmatprep.mubr.bf16.mxu0 0
    %198 = vmatmul.mubr.bf16.gmra.mxu0 %v163
    %v199 = vpop.f32.mrf.mxu0
    %v200 = vadd.f32 0.0, %v199
    %v201 = vpop.f32.mrf.mxu0
    %v202 = vpop.f32.mrf.mxu0
    %v203 = vadd.f32 0.0, %v202
    %v204 = vpop.f32.mrf.mxu0
    %205 = vdwg.mxu0
    %s206 = scalar_lea.vmem %s5, 16
    %v207 = vld [vmem:[%s206] sm:$0xf]
    %v208 = vld [vmem:[%s206 + $0x4] sm:$0xf]
    %v211 = vunpack.c.l.b16 %v207
    %v212 = vunpack.c.l.b16 %v208
    %v213 = vpack.c.b16 %v212, %v211
    %v215 = vsel %vm109, %v213, 0
    %217 = vmatprep.subr.bf16.mxu0 0
    %218 = vmatpush1.bf16.msra.mxu0 0
    %219 = vmatprep.subr.bf16.mxu0 0
    %220 = vmatpush1.bf16.msra.mxu0 0
    %221 = vmatprep.subr.bf16.mxu0 0
    %222 = vmatpush1.bf16.msra.mxu0 0
    %223 = vmatprep.subr.bf16.mxu0 0
    %224 = vmatpush1.bf16.msra.mxu0 0
    %225 = vmatprep.subr.bf16.mxu0 0
    %226 = vmatpush1.bf16.msra.mxu0 0
    %227 = vmatprep.subr.bf16.mxu0 0
    %228 = vmatpush1.bf16.msra.mxu0 0
    %229 = vmatprep.subr.bf16.mxu0 0
    %230 = vmatpush1.bf16.msra.mxu0 %v101
    %231 = vmatprep.subr.bf16.mxu0 0
    %232 = vmatpush1.bf16.msra.mxu0 %v100
    %233 = vmatprep.subr.bf16.mxu0 0
    %234 = vmatpush2.bf16.msra.mxu0 0
    %235 = vmatprep.subr.bf16.mxu0 0
    %236 = vmatpush2.bf16.msra.mxu0 0
    %237 = vmatprep.subr.bf16.mxu0 0
    %238 = vmatpush2.bf16.msra.mxu0 0
    %239 = vmatprep.subr.bf16.mxu0 0
    %240 = vmatpush2.bf16.msra.mxu0 0
    %241 = vmatprep.subr.bf16.mxu0 0
    %242 = vmatpush2.bf16.msra.mxu0 0
    %243 = vmatprep.subr.bf16.mxu0 0
    %244 = vmatpush2.bf16.msra.mxu0 0
    %245 = vmatprep.subr.bf16.mxu0 0
    %246 = vmatpush2.bf16.msra.mxu0 0
    %247 = vmatprep.subr.bf16.mxu0 0
    %248 = vmatpush2.bf16.msra.mxu0 0
    %249 = vmatprep.mubr.bf16.mxu0 0
    %250 = vmatmul.mubr.bf16.gmra.mxu0 %v215
    %v251 = vpop.f32.mrf.mxu0
    %v252 = vadd.f32 0.0, %v251
    %v253 = vpop.f32.mrf.mxu0
    %v254 = vpop.f32.mrf.mxu0
    %v255 = vadd.f32 0.0, %v254
    %v256 = vpop.f32.mrf.mxu0
    %257 = vdwg.mxu0
    %v258 = vpack.c.bf16 %v151, %v148
    %v259 = vpack.c.bf16 %v203, %v200
    %v260 = vpack.c.bf16 %v255, %v252
    %v261 = vld [vmem:[%s6] sm:$0xff]
    %v262 = vld [vmem:[%s6 + $0x8] sm:$0xff]
    %v263 = vld [vmem:[%s6 + $0x10] sm:$0xff]
    %v264 = vld [vmem:[%s6 + $0x18] sm:$0xff]
    %v265 = vld [vmem:[%s6 + $0x20] sm:$0xff]
    %v266 = vld [vmem:[%s6 + $0x28] sm:$0xff]
    %v267 = vld [vmem:[%s6 + $0x30] sm:$0xff]
    %v268 = vld [vmem:[%s6 + $0x38] sm:$0xff]
    %v269 = vld [vmem:[%s6 + $0x40] sm:$0xff]
    %v270 = vld [vmem:[%s6 + $0x48] sm:$0xff]
    %v271 = vld [vmem:[%s6 + $0x50] sm:$0xff]
    %v272 = vld [vmem:[%s6 + $0x58] sm:$0xff]
    %v273 = vld [vmem:[%s6 + $0x60] sm:$0xff]
    %v274 = vld [vmem:[%s6 + $0x68] sm:$0xff]
    %v275 = vld [vmem:[%s6 + $0x70] sm:$0xff]
    %v276 = vld [vmem:[%s6 + $0x78] sm:$0xff]
    %v277 = vld [vmem:[%s6 + $0x80] sm:$0xff]
    %v278 = vld [vmem:[%s6 + $0x88] sm:$0xff]
    %v279 = vld [vmem:[%s6 + $0x90] sm:$0xff]
    %v280 = vld [vmem:[%s6 + $0x98] sm:$0xff]
    %v281 = vld [vmem:[%s6 + $0xa0] sm:$0xff]
    %v282 = vld [vmem:[%s6 + $0xa8] sm:$0xff]
    %v283 = vld [vmem:[%s6 + $0xb0] sm:$0xff]
    %v284 = vld [vmem:[%s6 + $0xb8] sm:$0xff]
    %v285 = vld [vmem:[%s6 + $0xc0] sm:$0xff]
    %v286 = vld [vmem:[%s6 + $0xc8] sm:$0xff]
    %v287 = vld [vmem:[%s6 + $0xd0] sm:$0xff]
    %v288 = vld [vmem:[%s6 + $0xd8] sm:$0xff]
    %v289 = vld [vmem:[%s6 + $0xe0] sm:$0xff]
    %v290 = vld [vmem:[%s6 + $0xe8] sm:$0xff]
    %v291 = vld [vmem:[%s6 + $0xf0] sm:$0xff]
    %v292 = vld [vmem:[%s6 + $0xf8] sm:$0xff]
    %v293 = vld [vmem:[%s6 + $0x100] sm:$0xff]
    %v294 = vld [vmem:[%s6 + $0x108] sm:$0xff]
    %v295 = vld [vmem:[%s6 + $0x110] sm:$0xff]
    %v296 = vld [vmem:[%s6 + $0x118] sm:$0xff]
    %v297 = vld [vmem:[%s6 + $0x120] sm:$0xff]
    %v298 = vld [vmem:[%s6 + $0x128] sm:$0xff]
    %v299 = vld [vmem:[%s6 + $0x130] sm:$0xff]
    %v300 = vld [vmem:[%s6 + $0x138] sm:$0xff]
    %v301 = vld [vmem:[%s6 + $0x140] sm:$0xff]
    %v302 = vld [vmem:[%s6 + $0x148] sm:$0xff]
    %v303 = vld [vmem:[%s6 + $0x150] sm:$0xff]
    %v304 = vld [vmem:[%s6 + $0x158] sm:$0xff]
    %v305 = vld [vmem:[%s6 + $0x160] sm:$0xff]
    %v306 = vld [vmem:[%s6 + $0x168] sm:$0xff]
    %v307 = vld [vmem:[%s6 + $0x170] sm:$0xff]
    %v308 = vld [vmem:[%s6 + $0x178] sm:$0xff]
    %v309 = vld [vmem:[%s12] ss:$8 sm:$0x3]
    %v311 = vlaneseq
    %v312 = vshrl.u32 %v311, 7
    %v313 = vsub.s32 0, %v312
    %v314 = vrot.slane %v309, %v313
    %v315 = vlaneseq
    %v316 = vshrl.u32 %v315, 7
    %v317 = vsub.s32 1, %v316
    %v318 = vrot.slane %v309, %v317
    %v369 = vunpack.c.l.b16 %v261
    %v370 = vunpack.c.h.b16 %v261
    %v371 = vunpack.c.l.b16 %v262
    %v372 = vunpack.c.h.b16 %v262
    %v373 = vunpack.c.l.b16 %v263
    %v374 = vunpack.c.h.b16 %v263
    %v375 = vunpack.c.l.b16 %v264
    %v376 = vunpack.c.h.b16 %v264
    %v377 = vunpack.c.l.b16 %v265
    %v378 = vunpack.c.h.b16 %v265
    %v379 = vunpack.c.l.b16 %v266
    %v380 = vunpack.c.h.b16 %v266
    %v381 = vunpack.c.l.b16 %v267
    %v382 = vunpack.c.h.b16 %v267
    %v383 = vunpack.c.l.b16 %v268
    %v384 = vunpack.c.h.b16 %v268
    %v385 = vunpack.c.l.b16 %v269
    %v386 = vunpack.c.h.b16 %v269
    %v387 = vunpack.c.l.b16 %v270
    %v388 = vunpack.c.h.b16 %v270
    %v389 = vunpack.c.l.b16 %v271
    %v390 = vunpack.c.h.b16 %v271
    %v391 = vunpack.c.l.b16 %v272
    %v392 = vunpack.c.h.b16 %v272
    %v393 = vunpack.c.l.b16 %v273
    %v394 = vunpack.c.h.b16 %v273
    %v395 = vunpack.c.l.b16 %v274
    %v396 = vunpack.c.h.b16 %v274
    %v397 = vunpack.c.l.b16 %v275
    %v398 = vunpack.c.h.b16 %v275
    %v399 = vunpack.c.l.b16 %v276
    %v400 = vunpack.c.h.b16 %v276
    %v401 = vunpack.c.l.b16 %v277
    %v402 = vunpack.c.h.b16 %v277
    %v403 = vunpack.c.l.b16 %v278
    %v404 = vunpack.c.h.b16 %v278
    %v405 = vunpack.c.l.b16 %v279
    %v406 = vunpack.c.h.b16 %v279
    %v407 = vunpack.c.l.b16 %v280
    %v408 = vunpack.c.h.b16 %v280
    %v409 = vunpack.c.l.b16 %v281
    %v410 = vunpack.c.h.b16 %v281
    %v411 = vunpack.c.l.b16 %v282
    %v412 = vunpack.c.h.b16 %v282
    %v413 = vunpack.c.l.b16 %v283
    %v414 = vunpack.c.h.b16 %v283
    %v415 = vunpack.c.l.b16 %v284
    %v416 = vunpack.c.h.b16 %v284
    %v417 = vunpack.c.l.b16 %v285
    %v418 = vunpack.c.h.b16 %v285
    %v419 = vunpack.c.l.b16 %v286
    %v420 = vunpack.c.h.b16 %v286
    %v421 = vunpack.c.l.b16 %v287
    %v422 = vunpack.c.h.b16 %v287
    %v423 = vunpack.c.l.b16 %v288
    %v424 = vunpack.c.h.b16 %v288
    %v425 = vunpack.c.l.b16 %v289
    %v426 = vunpack.c.h.b16 %v289
    %v427 = vunpack.c.l.b16 %v290
    %v428 = vunpack.c.h.b16 %v290
    %v429 = vunpack.c.l.b16 %v291
    %v430 = vunpack.c.h.b16 %v291
    %v431 = vunpack.c.l.b16 %v292
    %v432 = vunpack.c.h.b16 %v292
    %v433 = vunpack.c.l.b16 %v293
    %v434 = vunpack.c.h.b16 %v293
    %v435 = vunpack.c.l.b16 %v294
    %v436 = vunpack.c.h.b16 %v294
    %v437 = vunpack.c.l.b16 %v295
    %v438 = vunpack.c.h.b16 %v295
    %v439 = vunpack.c.l.b16 %v296
    %v440 = vunpack.c.h.b16 %v296
    %v441 = vunpack.c.l.b16 %v297
    %v442 = vunpack.c.h.b16 %v297
    %v443 = vunpack.c.l.b16 %v298
    %v444 = vunpack.c.h.b16 %v298
    %v445 = vunpack.c.l.b16 %v299
    %v446 = vunpack.c.h.b16 %v299
    %v447 = vunpack.c.l.b16 %v300
    %v448 = vunpack.c.h.b16 %v300
    %v449 = vunpack.c.l.b16 %v301
    %v450 = vunpack.c.h.b16 %v301
    %v451 = vunpack.c.l.b16 %v302
    %v452 = vunpack.c.h.b16 %v302
    %v453 = vunpack.c.l.b16 %v303
    %v454 = vunpack.c.h.b16 %v303
    %v455 = vunpack.c.l.b16 %v304
    %v456 = vunpack.c.h.b16 %v304
    %v457 = vunpack.c.l.b16 %v305
    %v458 = vunpack.c.h.b16 %v305
    %v459 = vunpack.c.l.b16 %v306
    %v460 = vunpack.c.h.b16 %v306
    %v461 = vunpack.c.l.b16 %v307
    %v462 = vunpack.c.h.b16 %v307
    %v463 = vunpack.c.l.b16 %v308
    %v464 = vunpack.c.h.b16 %v308
    %v465 = vpack.c.b16 %v371, %v369
    %v466 = vpack.c.b16 %v372, %v370
    %v467 = vpack.c.b16 %v375, %v373
    %v468 = vpack.c.b16 %v376, %v374
    %v469 = vpack.c.b16 %v379, %v377
    %v470 = vpack.c.b16 %v380, %v378
    %v471 = vpack.c.b16 %v383, %v381
    %v472 = vpack.c.b16 %v384, %v382
    %v473 = vpack.c.b16 %v387, %v385
    %v474 = vpack.c.b16 %v388, %v386
    %v475 = vpack.c.b16 %v391, %v389
    %v476 = vpack.c.b16 %v392, %v390
    %v477 = vpack.c.b16 %v395, %v393
    %v478 = vpack.c.b16 %v396, %v394
    %v479 = vpack.c.b16 %v399, %v397
    %v480 = vpack.c.b16 %v400, %v398
    %v481 = vpack.c.b16 %v403, %v401
    %v482 = vpack.c.b16 %v404, %v402
    %v483 = vpack.c.b16 %v407, %v405
    %v484 = vpack.c.b16 %v408, %v406
    %v485 = vpack.c.b16 %v411, %v409
    %v486 = vpack.c.b16 %v412, %v410
    %v487 = vpack.c.b16 %v415, %v413
    %v488 = vpack.c.b16 %v416, %v414
    %v489 = vpack.c.b16 %v419, %v417
    %v490 = vpack.c.b16 %v420, %v418
    %v491 = vpack.c.b16 %v423, %v421
    %v492 = vpack.c.b16 %v424, %v422
    %v493 = vpack.c.b16 %v427, %v425
    %v494 = vpack.c.b16 %v428, %v426
    %v495 = vpack.c.b16 %v431, %v429
    %v496 = vpack.c.b16 %v432, %v430
    %v497 = vpack.c.b16 %v435, %v433
    %v498 = vpack.c.b16 %v436, %v434
    %v499 = vpack.c.b16 %v439, %v437
    %v500 = vpack.c.b16 %v440, %v438
    %v501 = vpack.c.b16 %v443, %v441
    %v502 = vpack.c.b16 %v444, %v442
    %v503 = vpack.c.b16 %v447, %v445
    %v504 = vpack.c.b16 %v448, %v446
    %v505 = vpack.c.b16 %v451, %v449
    %v506 = vpack.c.b16 %v452, %v450
    %v507 = vpack.c.b16 %v455, %v453
    %v508 = vpack.c.b16 %v456, %v454
    %v509 = vpack.c.b16 %v459, %v457
    %v510 = vpack.c.b16 %v460, %v458
    %v511 = vpack.c.b16 %v463, %v461
    %v512 = vpack.c.b16 %v464, %v462
    %561 = vmatprep.subr.bf16.mxu0 %v480
    %562 = vmatpush1.bf16.msra.mxu0 %v479
    %563 = vmatprep.subr.bf16.mxu0 %v478
    %564 = vmatpush1.bf16.msra.mxu0 %v477
    %565 = vmatprep.subr.bf16.mxu0 %v476
    %566 = vmatpush1.bf16.msra.mxu0 %v475
    %567 = vmatprep.subr.bf16.mxu0 %v474
    %568 = vmatpush1.bf16.msra.mxu0 %v473
    %569 = vmatprep.subr.bf16.mxu0 %v472
    %570 = vmatpush1.bf16.msra.mxu0 %v471
    %571 = vmatprep.subr.bf16.mxu0 %v470
    %572 = vmatpush1.bf16.msra.mxu0 %v469
    %573 = vmatprep.subr.bf16.mxu0 %v468
    %574 = vmatpush1.bf16.msra.mxu0 %v467
    %575 = vmatprep.subr.bf16.mxu0 %v466
    %576 = vmatpush1.bf16.msra.mxu0 %v465
    %577 = vmatprep.subr.bf16.mxu0 %v496
    %578 = vmatpush2.bf16.msra.mxu0 %v495
    %579 = vmatprep.subr.bf16.mxu0 %v494
    %580 = vmatpush2.bf16.msra.mxu0 %v493
    %581 = vmatprep.subr.bf16.mxu0 %v492
    %582 = vmatpush2.bf16.msra.mxu0 %v491
    %583 = vmatprep.subr.bf16.mxu0 %v490
    %584 = vmatpush2.bf16.msra.mxu0 %v489
    %585 = vmatprep.subr.bf16.mxu0 %v488
    %586 = vmatpush2.bf16.msra.mxu0 %v487
    %587 = vmatprep.subr.bf16.mxu0 %v486
    %588 = vmatpush2.bf16.msra.mxu0 %v485
    %589 = vmatprep.subr.bf16.mxu0 %v484
    %590 = vmatpush2.bf16.msra.mxu0 %v483
    %591 = vmatprep.subr.bf16.mxu0 %v482
    %592 = vmatpush2.bf16.msra.mxu0 %v481
    %593 = vmatprep.mubr.bf16.mxu0 %v259
    %594 = vmatmul.mubr.bf16.gmra.mxu0 %v258
    %v595 = vpop.f32.mrf.mxu0
    %v596 = vadd.f32 %v314, %v595
    %v597 = vpop.f32.mrf.mxu0
    %v598 = vadd.f32 %v318, %v597
    %v599 = vpop.f32.mrf.mxu0
    %v600 = vadd.f32 %v314, %v599
    %v601 = vpop.f32.mrf.mxu0
    %v602 = vadd.f32 %v318, %v601
    %603 = vdwg.mxu0
    %604 = vmatprep.subr.bf16.mxu0 %v512
    %605 = vmatpush1.bf16.msra.mxu0 %v511
    %606 = vmatprep.subr.bf16.mxu0 %v510
    %607 = vmatpush1.bf16.msra.mxu0 %v509
    %608 = vmatprep.subr.bf16.mxu0 %v508
    %609 = vmatpush1.bf16.msra.mxu0 %v507
    %610 = vmatprep.subr.bf16.mxu0 %v506
    %611 = vmatpush1.bf16.msra.mxu0 %v505
    %612 = vmatprep.subr.bf16.mxu0 %v504
    %613 = vmatpush1.bf16.msra.mxu0 %v503
    %614 = vmatprep.subr.bf16.mxu0 %v502
    %615 = vmatpush1.bf16.msra.mxu0 %v501
    %616 = vmatprep.subr.bf16.mxu0 %v500
    %617 = vmatpush1.bf16.msra.mxu0 %v499
    %618 = vmatprep.subr.bf16.mxu0 %v498
    %619 = vmatpush1.bf16.msra.mxu0 %v497
    %620 = vmatprep.subr.bf16.mxu0 0
    %621 = vmatpush2.bf16.msra.mxu0 0
    %622 = vmatprep.subr.bf16.mxu0 0
    %623 = vmatpush2.bf16.msra.mxu0 0
    %624 = vmatprep.subr.bf16.mxu0 0
    %625 = vmatpush2.bf16.msra.mxu0 0
    %626 = vmatprep.subr.bf16.mxu0 0
    %627 = vmatpush2.bf16.msra.mxu0 0
    %628 = vmatprep.subr.bf16.mxu0 0
    %629 = vmatpush2.bf16.msra.mxu0 0
    %630 = vmatprep.subr.bf16.mxu0 0
    %631 = vmatpush2.bf16.msra.mxu0 0
    %632 = vmatprep.subr.bf16.mxu0 0
    %633 = vmatpush2.bf16.msra.mxu0 0
    %634 = vmatprep.subr.bf16.mxu0 0
    %635 = vmatpush2.bf16.msra.mxu0 0
    %636 = vmatprep.mubr.bf16.mxu0 0
    %637 = vmatmul.mubr.bf16.gmra.mxu0 %v260
    %v638 = vpop.f32.mrf.mxu0
    %v639 = vadd.f32 %v596, %v638
    %v640 = vpop.f32.mrf.mxu0
    %v641 = vadd.f32 %v598, %v640
    %v642 = vpop.f32.mrf.mxu0
    %v643 = vadd.f32 %v600, %v642
    %v644 = vpop.f32.mrf.mxu0
    %v645 = vadd.f32 %v602, %v644
    %646 = vdwg.mxu0
    %v647 = vmax.f32 %v639, 0.0
    %v648 = vmax.f32 %v641, 0.0
    %v649 = vmax.f32 %v643, 0.0
    %v650 = vmax.f32 %v645, 0.0
    %v651 = vpack.c.bf16 %v649, %v647
    %v652 = vpack.c.bf16 %v650, %v648
    %v653 = vld [vmem:[%s7] sm:$0xf]
    %vm654 = vcmask 130048
    %v656 = vsel %vm654, %v653, 0
    %658 = vmatprep.subr.bf16.mxu0 0
    %659 = vmatpush1.bf16.msra.mxu0 0
    %660 = vmatprep.subr.bf16.mxu0 0
    %661 = vmatpush1.bf16.msra.mxu0 0
    %662 = vmatprep.subr.bf16.mxu0 0
    %663 = vmatpush1.bf16.msra.mxu0 0
    %664 = vmatprep.subr.bf16.mxu0 0
    %665 = vmatpush1.bf16.msra.mxu0 0
    %666 = vmatprep.subr.bf16.mxu0 0
    %667 = vmatpush1.bf16.msra.mxu0 0
    %668 = vmatprep.subr.bf16.mxu0 0
    %669 = vmatpush1.bf16.msra.mxu0 0
    %670 = vmatprep.subr.bf16.mxu0 0
    %671 = vmatpush1.bf16.msra.mxu0 0
    %672 = vmatprep.subr.bf16.mxu0 %v652
    %673 = vmatpush1.bf16.msra.mxu0 %v651
    %674 = vmatprep.subr.bf16.mxu0 0
    %675 = vmatpush2.bf16.msra.mxu0 0
    %676 = vmatprep.subr.bf16.mxu0 0
    %677 = vmatpush2.bf16.msra.mxu0 0
    %678 = vmatprep.subr.bf16.mxu0 0
    %679 = vmatpush2.bf16.msra.mxu0 0
    %680 = vmatprep.subr.bf16.mxu0 0
    %681 = vmatpush2.bf16.msra.mxu0 0
    %682 = vmatprep.subr.bf16.mxu0 0
    %683 = vmatpush2.bf16.msra.mxu0 0
    %684 = vmatprep.subr.bf16.mxu0 0
    %685 = vmatpush2.bf16.msra.mxu0 0
    %686 = vmatprep.subr.bf16.mxu0 0
    %687 = vmatpush2.bf16.msra.mxu0 0
    %688 = vmatprep.subr.bf16.mxu0 0
    %689 = vmatpush2.bf16.msra.mxu0 0
    %690 = vmatprep.mubr.bf16.mxu0 0
    %691 = vmatmul.mubr.bf16.gmra.mxu0 %v656
    %v692 = vpop.f32.mrf.mxu0
    %v693 = vadd.f32 0.0, %v692
    %v694 = vpop.f32.mrf.mxu0
    %v695 = vadd.f32 0.0, %v694
    %v696 = vpop.f32.mrf.mxu0
    %v697 = vpop.f32.mrf.mxu0
    %698 = vdwg.mxu0
    %s699 = scalar_lea.vmem %s7, 4
    %v700 = vld [vmem:[%s699] sm:$0xf]
    %v702 = vsel %vm654, %v700, 0
    %704 = vmatprep.subr.bf16.mxu0 0
    %705 = vmatpush1.bf16.msra.mxu0 0
    %706 = vmatprep.subr.bf16.mxu0 0
    %707 = vmatpush1.bf16.msra.mxu0 0
    %708 = vmatprep.subr.bf16.mxu0 0
    %709 = vmatpush1.bf16.msra.mxu0 0
    %710 = vmatprep.subr.bf16.mxu0 0
    %711 = vmatpush1.bf16.msra.mxu0 0
    %712 = vmatprep.subr.bf16.mxu0 0
    %713 = vmatpush1.bf16.msra.mxu0 0
    %714 = vmatprep.subr.bf16.mxu0 0
    %715 = vmatpush1.bf16.msra.mxu0 0
    %716 = vmatprep.subr.bf16.mxu0 0
    %717 = vmatpush1.bf16.msra.mxu0 0
    %718 = vmatprep.subr.bf16.mxu0 %v652
    %719 = vmatpush1.bf16.msra.mxu0 %v651
    %720 = vmatprep.subr.bf16.mxu0 0
    %721 = vmatpush2.bf16.msra.mxu0 0
    %722 = vmatprep.subr.bf16.mxu0 0
    %723 = vmatpush2.bf16.msra.mxu0 0
    %724 = vmatprep.subr.bf16.mxu0 0
    %725 = vmatpush2.bf16.msra.mxu0 0
    %726 = vmatprep.subr.bf16.mxu0 0
    %727 = vmatpush2.bf16.msra.mxu0 0
    %728 = vmatprep.subr.bf16.mxu0 0
    %729 = vmatpush2.bf16.msra.mxu0 0
    %730 = vmatprep.subr.bf16.mxu0 0
    %731 = vmatpush2.bf16.msra.mxu0 0
    %732 = vmatprep.subr.bf16.mxu0 0
    %733 = vmatpush2.bf16.msra.mxu0 0
    %734 = vmatprep.subr.bf16.mxu0 0
    %735 = vmatpush2.bf16.msra.mxu0 0
    %736 = vmatprep.mubr.bf16.mxu0 0
    %737 = vmatmul.mubr.bf16.gmra.mxu0 %v702
    %v738 = vpop.f32.mrf.mxu0
    %v739 = vadd.f32 0.0, %v738
    %v740 = vpop.f32.mrf.mxu0
    %v741 = vadd.f32 0.0, %v740
    %v742 = vpop.f32.mrf.mxu0
    %v743 = vpop.f32.mrf.mxu0
    %744 = vdwg.mxu0
    %s745 = scalar_lea.vmem %s7, 8
    %v746 = vld [vmem:[%s745] sm:$0xf]
    %v748 = vsel %vm654, %v746, 0
    %750 = vmatprep.subr.bf16.mxu0 0
    %751 = vmatpush1.bf16.msra.mxu0 0
    %752 = vmatprep.subr.bf16.mxu0 0
    %753 = vmatpush1.bf16.msra.mxu0 0
    %754 = vmatprep.subr.bf16.mxu0 0
    %755 = vmatpush1.bf16.msra.mxu0 0
    %756 = vmatprep.subr.bf16.mxu0 0
    %757 = vmatpush1.bf16.msra.mxu0 0
    %758 = vmatprep.subr.bf16.mxu0 0
    %759 = vmatpush1.bf16.msra.mxu0 0
    %760 = vmatprep.subr.bf16.mxu0 0
    %761 = vmatpush1.bf16.msra.mxu0 0
    %762 = vmatprep.subr.bf16.mxu0 0
    %763 = vmatpush1.bf16.msra.mxu0 0
    %764 = vmatprep.subr.bf16.mxu0 %v652
    %765 = vmatpush1.bf16.msra.mxu0 %v651
    %766 = vmatprep.subr.bf16.mxu0 0
    %767 = vmatpush2.bf16.msra.mxu0 0
    %768 = vmatprep.subr.bf16.mxu0 0
    %769 = vmatpush2.bf16.msra.mxu0 0
    %770 = vmatprep.subr.bf16.mxu0 0
    %771 = vmatpush2.bf16.msra.mxu0 0
    %772 = vmatprep.subr.bf16.mxu0 0
    %773 = vmatpush2.bf16.msra.mxu0 0
    %774 = vmatprep.subr.bf16.mxu0 0
    %775 = vmatpush2.bf16.msra.mxu0 0
    %776 = vmatprep.subr.bf16.mxu0 0
    %777 = vmatpush2.bf16.msra.mxu0 0
    %778 = vmatprep.subr.bf16.mxu0 0
    %779 = vmatpush2.bf16.msra.mxu0 0
    %780 = vmatprep.subr.bf16.mxu0 0
    %781 = vmatpush2.bf16.msra.mxu0 0
    %782 = vmatprep.mubr.bf16.mxu0 0
    %783 = vmatmul.mubr.bf16.gmra.mxu0 %v748
    %v784 = vpop.f32.mrf.mxu0
    %v785 = vadd.f32 0.0, %v784
    %v786 = vpop.f32.mrf.mxu0
    %v787 = vadd.f32 0.0, %v786
    %v788 = vpop.f32.mrf.mxu0
    %v789 = vpop.f32.mrf.mxu0
    %790 = vdwg.mxu0
    %v791 = vpack.c.bf16 %v693, %v693
    %v792 = vpack.c.bf16 %v695, %v695
    %v793 = vpack.c.bf16 %v739, %v739
    %v794 = vpack.c.bf16 %v741, %v741
    %v795 = vpack.c.bf16 %v785, %v785
    %v796 = vpack.c.bf16 %v787, %v787
    %v797 = vld [vmem:[%s8] sm:$0xf]
    %v798 = vld [vmem:[%s8 + $0x4] sm:$0xf]
    %v799 = vld [vmem:[%s8 + $0x8] sm:$0xf]
    %v800 = vld [vmem:[%s8 + $0xc] sm:$0xf]
    %v801 = vld [vmem:[%s8 + $0x10] sm:$0xf]
    %v802 = vld [vmem:[%s8 + $0x14] sm:$0xf]
    %v803 = vld [vmem:[%s8 + $0x18] sm:$0xf]
    %v804 = vld [vmem:[%s8 + $0x1c] sm:$0xf]
    %v805 = vld [vmem:[%s8 + $0x20] sm:$0xf]
    %v806 = vld [vmem:[%s8 + $0x24] sm:$0xf]
    %v807 = vld [vmem:[%s8 + $0x28] sm:$0xf]
    %v808 = vld [vmem:[%s8 + $0x2c] sm:$0xf]
    %v809 = vld [vmem:[%s8 + $0x30] sm:$0xf]
    %v810 = vld [vmem:[%s8 + $0x34] sm:$0xf]
    %v811 = vld [vmem:[%s8 + $0x38] sm:$0xf]
    %v812 = vld [vmem:[%s8 + $0x3c] sm:$0xf]
    %v813 = vld [vmem:[%s8 + $0x40] sm:$0xf]
    %v814 = vld [vmem:[%s8 + $0x44] sm:$0xf]
    %v815 = vld [vmem:[%s8 + $0x48] sm:$0xf]
    %v816 = vld [vmem:[%s8 + $0x4c] sm:$0xf]
    %v817 = vld [vmem:[%s8 + $0x50] sm:$0xf]
    %v818 = vld [vmem:[%s8 + $0x54] sm:$0xf]
    %v819 = vld [vmem:[%s8 + $0x58] sm:$0xf]
    %v820 = vld [vmem:[%s8 + $0x5c] sm:$0xf]
    %v821 = vld [vmem:[%s8 + $0x60] sm:$0xf]
    %v822 = vld [vmem:[%s8 + $0x64] sm:$0xf]
    %v823 = vld [vmem:[%s8 + $0x68] sm:$0xf]
    %v824 = vld [vmem:[%s8 + $0x6c] sm:$0xf]
    %v825 = vld [vmem:[%s8 + $0x70] sm:$0xf]
    %v826 = vld [vmem:[%s8 + $0x74] sm:$0xf]
    %v827 = vld [vmem:[%s8 + $0x78] sm:$0xf]
    %v828 = vld [vmem:[%s8 + $0x7c] sm:$0xf]
    %v829 = vld [vmem:[%s8 + $0x80] sm:$0xf]
    %v830 = vld [vmem:[%s8 + $0x84] sm:$0xf]
    %v831 = vld [vmem:[%s8 + $0x88] sm:$0xf]
    %v832 = vld [vmem:[%s8 + $0x8c] sm:$0xf]
    %v833 = vld [vmem:[%s8 + $0x90] sm:$0xf]
    %v834 = vld [vmem:[%s8 + $0x94] sm:$0xf]
    %v835 = vld [vmem:[%s8 + $0x98] sm:$0xf]
    %v836 = vld [vmem:[%s8 + $0x9c] sm:$0xf]
    %v837 = vld [vmem:[%s8 + $0xa0] sm:$0xf]
    %v838 = vld [vmem:[%s8 + $0xa4] sm:$0xf]
    %v839 = vld [vmem:[%s8 + $0xa8] sm:$0xf]
    %v840 = vld [vmem:[%s8 + $0xac] sm:$0xf]
    %v841 = vld [vmem:[%s8 + $0xb0] sm:$0xf]
    %v842 = vld [vmem:[%s8 + $0xb4] sm:$0xf]
    %v843 = vld [vmem:[%s8 + $0xb8] sm:$0xf]
    %v844 = vld [vmem:[%s8 + $0xbc] sm:$0xf]
    %v845 = vld [vmem:[%s8 + $0xc0] sm:$0xf]
    %v846 = vld [vmem:[%s8 + $0xc4] sm:$0xf]
    %v847 = vld [vmem:[%s8 + $0xc8] sm:$0xf]
    %v848 = vld [vmem:[%s8 + $0xcc] sm:$0xf]
    %v849 = vld [vmem:[%s8 + $0xd0] sm:$0xf]
    %v850 = vld [vmem:[%s8 + $0xd4] sm:$0xf]
    %v851 = vld [vmem:[%s8 + $0xd8] sm:$0xf]
    %v852 = vld [vmem:[%s8 + $0xdc] sm:$0xf]
    %v853 = vld [vmem:[%s8 + $0xe0] sm:$0xf]
    %v854 = vld [vmem:[%s8 + $0xe4] sm:$0xf]
    %v855 = vld [vmem:[%s8 + $0xe8] sm:$0xf]
    %v856 = vld [vmem:[%s8 + $0xec] sm:$0xf]
    %v857 = vld [vmem:[%s8 + $0xf0] sm:$0xf]
    %v858 = vld [vmem:[%s8 + $0xf4] sm:$0xf]
    %v859 = vld [vmem:[%s8 + $0xf8] sm:$0xf]
    %v860 = vld [vmem:[%s8 + $0xfc] sm:$0xf]
    %v861 = vld [vmem:[%s8 + $0x100] sm:$0xf]
    %v862 = vld [vmem:[%s8 + $0x104] sm:$0xf]
    %v863 = vld [vmem:[%s8 + $0x108] sm:$0xf]
    %v864 = vld [vmem:[%s8 + $0x10c] sm:$0xf]
    %v865 = vld [vmem:[%s8 + $0x110] sm:$0xf]
    %v866 = vld [vmem:[%s8 + $0x114] sm:$0xf]
    %v867 = vld [vmem:[%s8 + $0x118] sm:$0xf]
    %v868 = vld [vmem:[%s8 + $0x11c] sm:$0xf]
    %v869 = vld [vmem:[%s8 + $0x120] sm:$0xf]
    %v870 = vld [vmem:[%s8 + $0x124] sm:$0xf]
    %v871 = vld [vmem:[%s8 + $0x128] sm:$0xf]
    %v872 = vld [vmem:[%s8 + $0x12c] sm:$0xf]
    %v873 = vld [vmem:[%s8 + $0x130] sm:$0xf]
    %v874 = vld [vmem:[%s8 + $0x134] sm:$0xf]
    %v875 = vld [vmem:[%s8 + $0x138] sm:$0xf]
    %v876 = vld [vmem:[%s8 + $0x13c] sm:$0xf]
    %v877 = vld [vmem:[%s8 + $0x140] sm:$0xf]
    %v878 = vld [vmem:[%s8 + $0x144] sm:$0xf]
    %v879 = vld [vmem:[%s8 + $0x148] sm:$0xf]
    %v880 = vld [vmem:[%s8 + $0x14c] sm:$0xf]
    %v881 = vld [vmem:[%s8 + $0x150] sm:$0xf]
    %v882 = vld [vmem:[%s8 + $0x154] sm:$0xf]
    %v883 = vld [vmem:[%s8 + $0x158] sm:$0xf]
    %v884 = vld [vmem:[%s8 + $0x15c] sm:$0xf]
    %v885 = vld [vmem:[%s8 + $0x160] sm:$0xf]
    %v886 = vld [vmem:[%s8 + $0x164] sm:$0xf]
    %v887 = vld [vmem:[%s8 + $0x168] sm:$0xf]
    %v888 = vld [vmem:[%s8 + $0x16c] sm:$0xf]
    %v889 = vld [vmem:[%s8 + $0x170] sm:$0xf]
    %v890 = vld [vmem:[%s8 + $0x174] sm:$0xf]
    %v891 = vld [vmem:[%s8 + $0x178] sm:$0xf]
    %v892 = vld [vmem:[%s8 + $0x17c] sm:$0xf]
    %v893 = vld [vmem:[%s12 + $0x1] ss:$0 sm:$0xff]
    %v990 = vunpack.c.l.b16 %v797
    %v991 = vunpack.c.l.b16 %v798
    %v992 = vunpack.c.l.b16 %v799
    %v993 = vunpack.c.l.b16 %v800
    %v994 = vunpack.c.l.b16 %v801
    %v995 = vunpack.c.l.b16 %v802
    %v996 = vunpack.c.l.b16 %v803
    %v997 = vunpack.c.l.b16 %v804
    %v998 = vunpack.c.l.b16 %v805
    %v999 = vunpack.c.l.b16 %v806
    %v1000 = vunpack.c.l.b16 %v807
    %v1001 = vunpack.c.l.b16 %v808
    %v1002 = vunpack.c.l.b16 %v809
    %v1003 = vunpack.c.l.b16 %v810
    %v1004 = vunpack.c.l.b16 %v811
    %v1005 = vunpack.c.l.b16 %v812
    %v1006 = vunpack.c.l.b16 %v813
    %v1007 = vunpack.c.l.b16 %v814
    %v1008 = vunpack.c.l.b16 %v815
    %v1009 = vunpack.c.l.b16 %v816
    %v1010 = vunpack.c.l.b16 %v817
    %v1011 = vunpack.c.l.b16 %v818
    %v1012 = vunpack.c.l.b16 %v819
    %v1013 = vunpack.c.l.b16 %v820
    %v1014 = vunpack.c.l.b16 %v821
    %v1015 = vunpack.c.l.b16 %v822
    %v1016 = vunpack.c.l.b16 %v823
    %v1017 = vunpack.c.l.b16 %v824
    %v1018 = vunpack.c.l.b16 %v825
    %v1019 = vunpack.c.l.b16 %v826
    %v1020 = vunpack.c.l.b16 %v827
    %v1021 = vunpack.c.l.b16 %v828
    %v1022 = vunpack.c.l.b16 %v829
    %v1023 = vunpack.c.l.b16 %v830
    %v1024 = vunpack.c.l.b16 %v831
    %v1025 = vunpack.c.l.b16 %v832
    %v1026 = vunpack.c.l.b16 %v833
    %v1027 = vunpack.c.l.b16 %v834
    %v1028 = vunpack.c.l.b16 %v835
    %v1029 = vunpack.c.l.b16 %v836
    %v1030 = vunpack.c.l.b16 %v837
    %v1031 = vunpack.c.l.b16 %v838
    %v1032 = vunpack.c.l.b16 %v839
    %v1033 = vunpack.c.l.b16 %v840
    %v1034 = vunpack.c.l.b16 %v841
    %v1035 = vunpack.c.l.b16 %v842
    %v1036 = vunpack.c.l.b16 %v843
    %v1037 = vunpack.c.l.b16 %v844
    %v1038 = vunpack.c.l.b16 %v845
    %v1039 = vunpack.c.l.b16 %v846
    %v1040 = vunpack.c.l.b16 %v847
    %v1041 = vunpack.c.l.b16 %v848
    %v1042 = vunpack.c.l.b16 %v849
    %v1043 = vunpack.c.l.b16 %v850
    %v1044 = vunpack.c.l.b16 %v851
    %v1045 = vunpack.c.l.b16 %v852
    %v1046 = vunpack.c.l.b16 %v853
    %v1047 = vunpack.c.l.b16 %v854
    %v1048 = vunpack.c.l.b16 %v855
    %v1049 = vunpack.c.l.b16 %v856
    %v1050 = vunpack.c.l.b16 %v857
    %v1051 = vunpack.c.l.b16 %v858
    %v1052 = vunpack.c.l.b16 %v859
    %v1053 = vunpack.c.l.b16 %v860
    %v1054 = vunpack.c.l.b16 %v861
    %v1055 = vunpack.c.l.b16 %v862
    %v1056 = vunpack.c.l.b16 %v863
    %v1057 = vunpack.c.l.b16 %v864
    %v1058 = vunpack.c.l.b16 %v865
    %v1059 = vunpack.c.l.b16 %v866
    %v1060 = vunpack.c.l.b16 %v867
    %v1061 = vunpack.c.l.b16 %v868
    %v1062 = vunpack.c.l.b16 %v869
    %v1063 = vunpack.c.l.b16 %v870
    %v1064 = vunpack.c.l.b16 %v871
    %v1065 = vunpack.c.l.b16 %v872
    %v1066 = vunpack.c.l.b16 %v873
    %v1067 = vunpack.c.l.b16 %v874
    %v1068 = vunpack.c.l.b16 %v875
    %v1069 = vunpack.c.l.b16 %v876
    %v1070 = vunpack.c.l.b16 %v877
    %v1071 = vunpack.c.l.b16 %v878
    %v1072 = vunpack.c.l.b16 %v879
    %v1073 = vunpack.c.l.b16 %v880
    %v1074 = vunpack.c.l.b16 %v881
    %v1075 = vunpack.c.l.b16 %v882
    %v1076 = vunpack.c.l.b16 %v883
    %v1077 = vunpack.c.l.b16 %v884
    %v1078 = vunpack.c.l.b16 %v885
    %v1079 = vunpack.c.l.b16 %v886
    %v1080 = vunpack.c.l.b16 %v887
    %v1081 = vunpack.c.l.b16 %v888
    %v1082 = vunpack.c.l.b16 %v889
    %v1083 = vunpack.c.l.b16 %v890
    %v1084 = vunpack.c.l.b16 %v891
    %v1085 = vunpack.c.l.b16 %v892
    %v1086 = vpack.c.b16 %v991, %v990
    %v1087 = vpack.c.b16 %v993, %v992
    %v1088 = vpack.c.b16 %v995, %v994
    %v1089 = vpack.c.b16 %v997, %v996
    %v1090 = vpack.c.b16 %v999, %v998
    %v1091 = vpack.c.b16 %v1001, %v1000
    %v1092 = vpack.c.b16 %v1003, %v1002
    %v1093 = vpack.c.b16 %v1005, %v1004
    %v1094 = vpack.c.b16 %v1007, %v1006
    %v1095 = vpack.c.b16 %v1009, %v1008
    %v1096 = vpack.c.b16 %v1011, %v1010
    %v1097 = vpack.c.b16 %v1013, %v1012
    %v1098 = vpack.c.b16 %v1015, %v1014
    %v1099 = vpack.c.b16 %v1017, %v1016
    %v1100 = vpack.c.b16 %v1019, %v1018
    %v1101 = vpack.c.b16 %v1021, %v1020
    %v1102 = vpack.c.b16 %v1023, %v1022
    %v1103 = vpack.c.b16 %v1025, %v1024
    %v1104 = vpack.c.b16 %v1027, %v1026
    %v1105 = vpack.c.b16 %v1029, %v1028
    %v1106 = vpack.c.b16 %v1031, %v1030
    %v1107 = vpack.c.b16 %v1033, %v1032
    %v1108 = vpack.c.b16 %v1035, %v1034
    %v1109 = vpack.c.b16 %v1037, %v1036
    %v1110 = vpack.c.b16 %v1039, %v1038
    %v1111 = vpack.c.b16 %v1041, %v1040
    %v1112 = vpack.c.b16 %v1043, %v1042
    %v1113 = vpack.c.b16 %v1045, %v1044
    %v1114 = vpack.c.b16 %v1047, %v1046
    %v1115 = vpack.c.b16 %v1049, %v1048
    %v1116 = vpack.c.b16 %v1051, %v1050
    %v1117 = vpack.c.b16 %v1053, %v1052
    %v1118 = vpack.c.b16 %v1055, %v1054
    %v1119 = vpack.c.b16 %v1057, %v1056
    %v1120 = vpack.c.b16 %v1059, %v1058
    %v1121 = vpack.c.b16 %v1061, %v1060
    %v1122 = vpack.c.b16 %v1063, %v1062
    %v1123 = vpack.c.b16 %v1065, %v1064
    %v1124 = vpack.c.b16 %v1067, %v1066
    %v1125 = vpack.c.b16 %v1069, %v1068
    %v1126 = vpack.c.b16 %v1071, %v1070
    %v1127 = vpack.c.b16 %v1073, %v1072
    %v1128 = vpack.c.b16 %v1075, %v1074
    %v1129 = vpack.c.b16 %v1077, %v1076
    %v1130 = vpack.c.b16 %v1079, %v1078
    %v1131 = vpack.c.b16 %v1081, %v1080
    %v1132 = vpack.c.b16 %v1083, %v1082
    %v1133 = vpack.c.b16 %v1085, %v1084
    %1182 = vmatprep.subr.bf16.mxu0 0
    %1183 = vmatpush1.bf16.msra.mxu0 %v1093
    %1184 = vmatprep.subr.bf16.mxu0 0
    %1185 = vmatpush1.bf16.msra.mxu0 %v1092
    %1186 = vmatprep.subr.bf16.mxu0 0
    %1187 = vmatpush1.bf16.msra.mxu0 %v1091
    %1188 = vmatprep.subr.bf16.mxu0 0
    %1189 = vmatpush1.bf16.msra.mxu0 %v1090
    %1190 = vmatprep.subr.bf16.mxu0 0
    %1191 = vmatpush1.bf16.msra.mxu0 %v1089
    %1192 = vmatprep.subr.bf16.mxu0 0
    %1193 = vmatpush1.bf16.msra.mxu0 %v1088
    %1194 = vmatprep.subr.bf16.mxu0 0
    %1195 = vmatpush1.bf16.msra.mxu0 %v1087
    %1196 = vmatprep.subr.bf16.mxu0 0
    %1197 = vmatpush1.bf16.msra.mxu0 %v1086
    %1198 = vmatprep.subr.bf16.mxu0 0
    %1199 = vmatpush2.bf16.msra.mxu0 %v1101
    %1200 = vmatprep.subr.bf16.mxu0 0
    %1201 = vmatpush2.bf16.msra.mxu0 %v1100
    %1202 = vmatprep.subr.bf16.mxu0 0
    %1203 = vmatpush2.bf16.msra.mxu0 %v1099
    %1204 = vmatprep.subr.bf16.mxu0 0
    %1205 = vmatpush2.bf16.msra.mxu0 %v1098
    %1206 = vmatprep.subr.bf16.mxu0 0
    %1207 = vmatpush2.bf16.msra.mxu0 %v1097
    %1208 = vmatprep.subr.bf16.mxu0 0
    %1209 = vmatpush2.bf16.msra.mxu0 %v1096
    %1210 = vmatprep.subr.bf16.mxu0 0
    %1211 = vmatpush2.bf16.msra.mxu0 %v1095
    %1212 = vmatprep.subr.bf16.mxu0 0
    %1213 = vmatpush2.bf16.msra.mxu0 %v1094
    %1214 = vmatprep.mubr.bf16.mxu0 %v792
    %1215 = vmatmul.mubr.bf16.gmra.mxu0 %v791
    %v1216 = vpop.f32.mrf.mxu0
    %v1217 = vadd.f32 %v893, %v1216
    %v1218 = vpop.f32.mrf.mxu0
    %v1219 = vpop.f32.mrf.mxu0
    %v1220 = vpop.f32.mrf.mxu0
    %1221 = vdwg.mxu0
    %1222 = vmatprep.subr.bf16.mxu0 0
    %1223 = vmatpush1.bf16.msra.mxu0 %v1109
    %1224 = vmatprep.subr.bf16.mxu0 0
    %1225 = vmatpush1.bf16.msra.mxu0 %v1108
    %1226 = vmatprep.subr.bf16.mxu0 0
    %1227 = vmatpush1.bf16.msra.mxu0 %v1107
    %1228 = vmatprep.subr.bf16.mxu0 0
    %1229 = vmatpush1.bf16.msra.mxu0 %v1106
    %1230 = vmatprep.subr.bf16.mxu0 0
    %1231 = vmatpush1.bf16.msra.mxu0 %v1105
    %1232 = vmatprep.subr.bf16.mxu0 0
    %1233 = vmatpush1.bf16.msra.mxu0 %v1104
    %1234 = vmatprep.subr.bf16.mxu0 0
    %1235 = vmatpush1.bf16.msra.mxu0 %v1103
    %1236 = vmatprep.subr.bf16.mxu0 0
    %1237 = vmatpush1.bf16.msra.mxu0 %v1102
    %1238 = vmatprep.subr.bf16.mxu0 0
    %1239 = vmatpush2.bf16.msra.mxu0 %v1117
    %1240 = vmatprep.subr.bf16.mxu0 0
    %1241 = vmatpush2.bf16.msra.mxu0 %v1116
    %1242 = vmatprep.subr.bf16.mxu0 0
    %1243 = vmatpush2.bf16.msra.mxu0 %v1115
    %1244 = vmatprep.subr.bf16.mxu0 0
    %1245 = vmatpush2.bf16.msra.mxu0 %v1114
    %1246 = vmatprep.subr.bf16.mxu0 0
    %1247 = vmatpush2.bf16.msra.mxu0 %v1113
    %1248 = vmatprep.subr.bf16.mxu0 0
    %1249 = vmatpush2.bf16.msra.mxu0 %v1112
    %1250 = vmatprep.subr.bf16.mxu0 0
    %1251 = vmatpush2.bf16.msra.mxu0 %v1111
    %1252 = vmatprep.subr.bf16.mxu0 0
    %1253 = vmatpush2.bf16.msra.mxu0 %v1110
    %1254 = vmatprep.mubr.bf16.mxu0 %v794
    %1255 = vmatmul.mubr.bf16.gmra.mxu0 %v793
    %v1256 = vpop.f32.mrf.mxu0
    %v1257 = vadd.f32 %v1217, %v1256
    %v1258 = vpop.f32.mrf.mxu0
    %v1259 = vpop.f32.mrf.mxu0
    %v1260 = vpop.f32.mrf.mxu0
    %1261 = vdwg.mxu0
    %1262 = vmatprep.subr.bf16.mxu0 0
    %1263 = vmatpush1.bf16.msra.mxu0 %v1125
    %1264 = vmatprep.subr.bf16.mxu0 0
    %1265 = vmatpush1.bf16.msra.mxu0 %v1124
    %1266 = vmatprep.subr.bf16.mxu0 0
    %1267 = vmatpush1.bf16.msra.mxu0 %v1123
    %1268 = vmatprep.subr.bf16.mxu0 0
    %1269 = vmatpush1.bf16.msra.mxu0 %v1122
    %1270 = vmatprep.subr.bf16.mxu0 0
    %1271 = vmatpush1.bf16.msra.mxu0 %v1121
    %1272 = vmatprep.subr.bf16.mxu0 0
    %1273 = vmatpush1.bf16.msra.mxu0 %v1120
    %1274 = vmatprep.subr.bf16.mxu0 0
    %1275 = vmatpush1.bf16.msra.mxu0 %v1119
    %1276 = vmatprep.subr.bf16.mxu0 0
    %1277 = vmatpush1.bf16.msra.mxu0 %v1118
    %1278 = vmatprep.subr.bf16.mxu0 0
    %1279 = vmatpush2.bf16.msra.mxu0 %v1133
    %1280 = vmatprep.subr.bf16.mxu0 0
    %1281 = vmatpush2.bf16.msra.mxu0 %v1132
    %1282 = vmatprep.subr.bf16.mxu0 0
    %1283 = vmatpush2.bf16.msra.mxu0 %v1131
    %1284 = vmatprep.subr.bf16.mxu0 0
    %1285 = vmatpush2.bf16.msra.mxu0 %v1130
    %1286 = vmatprep.subr.bf16.mxu0 0
    %1287 = vmatpush2.bf16.msra.mxu0 %v1129
    %1288 = vmatprep.subr.bf16.mxu0 0
    %1289 = vmatpush2.bf16.msra.mxu0 %v1128
    %1290 = vmatprep.subr.bf16.mxu0 0
    %1291 = vmatpush2.bf16.msra.mxu0 %v1127
    %1292 = vmatprep.subr.bf16.mxu0 0
    %1293 = vmatpush2.bf16.msra.mxu0 %v1126
    %1294 = vmatprep.mubr.bf16.mxu0 %v796
    %1295 = vmatmul.mubr.bf16.gmra.mxu0 %v795
    %v1296 = vpop.f32.mrf.mxu0
    %v1297 = vadd.f32 %v1257, %v1296
    %v1298 = vpop.f32.mrf.mxu0
    %v1299 = vpop.f32.mrf.mxu0
    %v1300 = vpop.f32.mrf.mxu0
    %1301 = vdwg.mxu0
    %v1302 = vmax.f32 %v1297, 0.0
    %v1303 = vpack.c.bf16 %v1302, %v1302
    %v1304 = vld [vmem:[%s9] sm:$0x1]
    %vm1305 = vcmask 64512
    %v1307 = vsel %vm1305, %v1304, 0
    %vm1309 = vcmask 1043456
    %v1311 = vsel %vm1309, %v1303, 0
    %1313 = vmatprep.subr.bf16.mxu0 0
    %1314 = vmatpush1.bf16.msra.mxu0 0
    %1315 = vmatprep.subr.bf16.mxu0 0
    %1316 = vmatpush1.bf16.msra.mxu0 0
    %1317 = vmatprep.subr.bf16.mxu0 0
    %1318 = vmatpush1.bf16.msra.mxu0 0
    %1319 = vmatprep.subr.bf16.mxu0 0
    %1320 = vmatpush1.bf16.msra.mxu0 0
    %1321 = vmatprep.subr.bf16.mxu0 0
    %1322 = vmatpush1.bf16.msra.mxu0 0
    %1323 = vmatprep.subr.bf16.mxu0 0
    %1324 = vmatpush1.bf16.msra.mxu0 0
    %1325 = vmatprep.subr.bf16.mxu0 0
    %1326 = vmatpush1.bf16.msra.mxu0 0
    %1327 = vmatprep.subr.bf16.mxu0 0
    %1328 = vmatpush1.bf16.msra.mxu0 %v1311
    %1329 = vmatprep.subr.bf16.mxu0 0
    %1330 = vmatpush2.bf16.msra.mxu0 0
    %1331 = vmatprep.subr.bf16.mxu0 0
    %1332 = vmatpush2.bf16.msra.mxu0 0
    %1333 = vmatprep.subr.bf16.mxu0 0
    %1334 = vmatpush2.bf16.msra.mxu0 0
    %1335 = vmatprep.subr.bf16.mxu0 0
    %1336 = vmatpush2.bf16.msra.mxu0 0
    %1337 = vmatprep.subr.bf16.mxu0 0
    %1338 = vmatpush2.bf16.msra.mxu0 0
    %1339 = vmatprep.subr.bf16.mxu0 0
    %1340 = vmatpush2.bf16.msra.mxu0 0
    %1341 = vmatprep.subr.bf16.mxu0 0
    %1342 = vmatpush2.bf16.msra.mxu0 0
    %1343 = vmatprep.subr.bf16.mxu0 0
    %1344 = vmatpush2.bf16.msra.mxu0 0
    %1345 = vmatprep.mubr.bf16.mxu0 0
    %1346 = vmatmul.mubr.bf16.gmra.mxu0 %v1307
    %v1347 = vpop.f32.mrf.mxu0
    %v1348 = vadd.f32 0.0, %v1347
    %v1349 = vpop.f32.mrf.mxu0
    %v1350 = vpop.f32.mrf.mxu0
    %v1351 = vpop.f32.mrf.mxu0
    %1352 = vdwg.mxu0
    %s1353 = scalar_lea.vmem %s9, 1
    %v1354 = vld [vmem:[%s1353] sm:$0x1]
    %v1356 = vsel %vm1305, %v1354, 0
    %1358 = vmatprep.subr.bf16.mxu0 0
    %1359 = vmatpush1.bf16.msra.mxu0 0
    %1360 = vmatprep.subr.bf16.mxu0 0
    %1361 = vmatpush1.bf16.msra.mxu0 0
    %1362 = vmatprep.subr.bf16.mxu0 0
    %1363 = vmatpush1.bf16.msra.mxu0 0
    %1364 = vmatprep.subr.bf16.mxu0 0
    %1365 = vmatpush1.bf16.msra.mxu0 0
    %1366 = vmatprep.subr.bf16.mxu0 0
    %1367 = vmatpush1.bf16.msra.mxu0 0
    %1368 = vmatprep.subr.bf16.mxu0 0
    %1369 = vmatpush1.bf16.msra.mxu0 0
    %1370 = vmatprep.subr.bf16.mxu0 0
    %1371 = vmatpush1.bf16.msra.mxu0 0
    %1372 = vmatprep.subr.bf16.mxu0 0
    %1373 = vmatpush1.bf16.msra.mxu0 %v1311
    %1374 = vmatprep.subr.bf16.mxu0 0
    %1375 = vmatpush2.bf16.msra.mxu0 0
    %1376 = vmatprep.subr.bf16.mxu0 0
    %1377 = vmatpush2.bf16.msra.mxu0 0
    %1378 = vmatprep.subr.bf16.mxu0 0
    %1379 = vmatpush2.bf16.msra.mxu0 0
    %1380 = vmatprep.subr.bf16.mxu0 0
    %1381 = vmatpush2.bf16.msra.mxu0 0
    %1382 = vmatprep.subr.bf16.mxu0 0
    %1383 = vmatpush2.bf16.msra.mxu0 0
    %1384 = vmatprep.subr.bf16.mxu0 0
    %1385 = vmatpush2.bf16.msra.mxu0 0
    %1386 = vmatprep.subr.bf16.mxu0 0
    %1387 = vmatpush2.bf16.msra.mxu0 0
    %1388 = vmatprep.subr.bf16.mxu0 0
    %1389 = vmatpush2.bf16.msra.mxu0 0
    %1390 = vmatprep.mubr.bf16.mxu0 0
    %1391 = vmatmul.mubr.bf16.gmra.mxu0 %v1356
    %v1392 = vpop.f32.mrf.mxu0
    %v1393 = vadd.f32 0.0, %v1392
    %v1394 = vpop.f32.mrf.mxu0
    %v1395 = vpop.f32.mrf.mxu0
    %v1396 = vpop.f32.mrf.mxu0
    %1397 = vdwg.mxu0
    %s1398 = scalar_lea.vmem %s9, 2
    %v1399 = vld [vmem:[%s1398] sm:$0x1]
    %v1401 = vsel %vm1305, %v1399, 0
    %1403 = vmatprep.subr.bf16.mxu0 0
    %1404 = vmatpush1.bf16.msra.mxu0 0
    %1405 = vmatprep.subr.bf16.mxu0 0
    %1406 = vmatpush1.bf16.msra.mxu0 0
    %1407 = vmatprep.subr.bf16.mxu0 0
    %1408 = vmatpush1.bf16.msra.mxu0 0
    %1409 = vmatprep.subr.bf16.mxu0 0
    %1410 = vmatpush1.bf16.msra.mxu0 0
    %1411 = vmatprep.subr.bf16.mxu0 0
    %1412 = vmatpush1.bf16.msra.mxu0 0
    %1413 = vmatprep.subr.bf16.mxu0 0
    %1414 = vmatpush1.bf16.msra.mxu0 0
    %1415 = vmatprep.subr.bf16.mxu0 0
    %1416 = vmatpush1.bf16.msra.mxu0 0
    %1417 = vmatprep.subr.bf16.mxu0 0
    %1418 = vmatpush1.bf16.msra.mxu0 %v1311
    %1419 = vmatprep.subr.bf16.mxu0 0
    %1420 = vmatpush2.bf16.msra.mxu0 0
    %1421 = vmatprep.subr.bf16.mxu0 0
    %1422 = vmatpush2.bf16.msra.mxu0 0
    %1423 = vmatprep.subr.bf16.mxu0 0
    %1424 = vmatpush2.bf16.msra.mxu0 0
    %1425 = vmatprep.subr.bf16.mxu0 0
    %1426 = vmatpush2.bf16.msra.mxu0 0
    %1427 = vmatprep.subr.bf16.mxu0 0
    %1428 = vmatpush2.bf16.msra.mxu0 0
    %1429 = vmatprep.subr.bf16.mxu0 0
    %1430 = vmatpush2.bf16.msra.mxu0 0
    %1431 = vmatprep.subr.bf16.mxu0 0
    %1432 = vmatpush2.bf16.msra.mxu0 0
    %1433 = vmatprep.subr.bf16.mxu0 0
    %1434 = vmatpush2.bf16.msra.mxu0 0
    %1435 = vmatprep.mubr.bf16.mxu0 0
    %1436 = vmatmul.mubr.bf16.gmra.mxu0 %v1401
    %v1437 = vpop.f32.mrf.mxu0
    %v1438 = vadd.f32 0.0, %v1437
    %v1439 = vpop.f32.mrf.mxu0
    %v1440 = vpop.f32.mrf.mxu0
    %v1441 = vpop.f32.mrf.mxu0
    %1442 = vdwg.mxu0
    %s1443 = scalar_lea.vmem %s9, 3
    %v1444 = vld [vmem:[%s1443] sm:$0x1]
    %v1446 = vsel %vm1305, %v1444, 0
    %1448 = vmatprep.subr.bf16.mxu0 0
    %1449 = vmatpush1.bf16.msra.mxu0 0
    %1450 = vmatprep.subr.bf16.mxu0 0
    %1451 = vmatpush1.bf16.msra.mxu0 0
    %1452 = vmatprep.subr.bf16.mxu0 0
    %1453 = vmatpush1.bf16.msra.mxu0 0
    %1454 = vmatprep.subr.bf16.mxu0 0
    %1455 = vmatpush1.bf16.msra.mxu0 0
    %1456 = vmatprep.subr.bf16.mxu0 0
    %1457 = vmatpush1.bf16.msra.mxu0 0
    %1458 = vmatprep.subr.bf16.mxu0 0
    %1459 = vmatpush1.bf16.msra.mxu0 0
    %1460 = vmatprep.subr.bf16.mxu0 0
    %1461 = vmatpush1.bf16.msra.mxu0 0
    %1462 = vmatprep.subr.bf16.mxu0 0
    %1463 = vmatpush1.bf16.msra.mxu0 %v1311
    %1464 = vmatprep.subr.bf16.mxu0 0
    %1465 = vmatpush2.bf16.msra.mxu0 0
    %1466 = vmatprep.subr.bf16.mxu0 0
    %1467 = vmatpush2.bf16.msra.mxu0 0
    %1468 = vmatprep.subr.bf16.mxu0 0
    %1469 = vmatpush2.bf16.msra.mxu0 0
    %1470 = vmatprep.subr.bf16.mxu0 0
    %1471 = vmatpush2.bf16.msra.mxu0 0
    %1472 = vmatprep.subr.bf16.mxu0 0
    %1473 = vmatpush2.bf16.msra.mxu0 0
    %1474 = vmatprep.subr.bf16.mxu0 0
    %1475 = vmatpush2.bf16.msra.mxu0 0
    %1476 = vmatprep.subr.bf16.mxu0 0
    %1477 = vmatpush2.bf16.msra.mxu0 0
    %1478 = vmatprep.subr.bf16.mxu0 0
    %1479 = vmatpush2.bf16.msra.mxu0 0
    %1480 = vmatprep.mubr.bf16.mxu0 0
    %1481 = vmatmul.mubr.bf16.gmra.mxu0 %v1446
    %v1482 = vpop.f32.mrf.mxu0
    %v1483 = vadd.f32 0.0, %v1482
    %v1484 = vpop.f32.mrf.mxu0
    %v1485 = vpop.f32.mrf.mxu0
    %v1486 = vpop.f32.mrf.mxu0
    %1487 = vdwg.mxu0
    %v1488 = vpack.c.bf16 %v1348, %v1348
    %v1489 = vpack.c.bf16 %v1393, %v1393
    %v1490 = vpack.c.bf16 %v1438, %v1438
    %v1491 = vpack.c.bf16 %v1483, %v1483
    %v1492 = vld [vmem:[%s10] sm:$0xf]
    %v1493 = vld [vmem:[%s10 + $0x4] sm:$0xf]
    %v1494 = vld [vmem:[%s10 + $0x8] sm:$0xf]
    %v1495 = vld [vmem:[%s10 + $0xc] sm:$0xf]
    %v1496 = vld [vmem:[%s10 + $0x10] sm:$0xf]
    %v1497 = vld [vmem:[%s10 + $0x14] sm:$0xf]
    %v1498 = vld [vmem:[%s10 + $0x18] sm:$0xf]
    %v1499 = vld [vmem:[%s10 + $0x1c] sm:$0xf]
    %v1500 = vld [vmem:[%s10 + $0x20] sm:$0xf]
    %v1501 = vld [vmem:[%s10 + $0x24] sm:$0xf]
    %v1502 = vld [vmem:[%s10 + $0x28] sm:$0xf]
    %v1503 = vld [vmem:[%s10 + $0x2c] sm:$0xf]
    %v1504 = vld [vmem:[%s10 + $0x30] sm:$0xf]
    %v1505 = vld [vmem:[%s10 + $0x34] sm:$0xf]
    %v1506 = vld [vmem:[%s10 + $0x38] sm:$0xf]
    %v1507 = vld [vmem:[%s10 + $0x3c] sm:$0xf]
    %v1508 = vld [vmem:[%s10 + $0x40] sm:$0xf]
    %v1509 = vld [vmem:[%s10 + $0x44] sm:$0xf]
    %v1510 = vld [vmem:[%s10 + $0x48] sm:$0xf]
    %v1511 = vld [vmem:[%s10 + $0x4c] sm:$0xf]
    %v1512 = vld [vmem:[%s10 + $0x50] sm:$0xf]
    %v1513 = vld [vmem:[%s10 + $0x54] sm:$0xf]
    %v1514 = vld [vmem:[%s10 + $0x58] sm:$0xf]
    %v1515 = vld [vmem:[%s10 + $0x5c] sm:$0xf]
    %v1516 = vld [vmem:[%s10 + $0x60] sm:$0xf]
    %v1517 = vld [vmem:[%s10 + $0x64] sm:$0xf]
    %v1518 = vld [vmem:[%s10 + $0x68] sm:$0xf]
    %v1519 = vld [vmem:[%s10 + $0x6c] sm:$0xf]
    %v1520 = vld [vmem:[%s10 + $0x70] sm:$0xf]
    %v1521 = vld [vmem:[%s10 + $0x74] sm:$0xf]
    %v1522 = vld [vmem:[%s10 + $0x78] sm:$0xf]
    %v1523 = vld [vmem:[%s10 + $0x7c] sm:$0xf]
    %v1524 = vld [vmem:[%s10 + $0x80] sm:$0xf]
    %v1525 = vld [vmem:[%s10 + $0x84] sm:$0xf]
    %v1526 = vld [vmem:[%s10 + $0x88] sm:$0xf]
    %v1527 = vld [vmem:[%s10 + $0x8c] sm:$0xf]
    %v1528 = vld [vmem:[%s10 + $0x90] sm:$0xf]
    %v1529 = vld [vmem:[%s10 + $0x94] sm:$0xf]
    %v1530 = vld [vmem:[%s10 + $0x98] sm:$0xf]
    %v1531 = vld [vmem:[%s10 + $0x9c] sm:$0xf]
    %v1532 = vld [vmem:[%s10 + $0xa0] sm:$0xf]
    %v1533 = vld [vmem:[%s10 + $0xa4] sm:$0xf]
    %v1534 = vld [vmem:[%s10 + $0xa8] sm:$0xf]
    %v1535 = vld [vmem:[%s10 + $0xac] sm:$0xf]
    %v1536 = vld [vmem:[%s10 + $0xb0] sm:$0xf]
    %v1537 = vld [vmem:[%s10 + $0xb4] sm:$0xf]
    %v1538 = vld [vmem:[%s10 + $0xb8] sm:$0xf]
    %v1539 = vld [vmem:[%s10 + $0xbc] sm:$0xf]
    %v1540 = vld [vmem:[%s10 + $0xc0] sm:$0xf]
    %v1541 = vld [vmem:[%s10 + $0xc4] sm:$0xf]
    %v1542 = vld [vmem:[%s10 + $0xc8] sm:$0xf]
    %v1543 = vld [vmem:[%s10 + $0xcc] sm:$0xf]
    %v1544 = vld [vmem:[%s10 + $0xd0] sm:$0xf]
    %v1545 = vld [vmem:[%s10 + $0xd4] sm:$0xf]
    %v1546 = vld [vmem:[%s10 + $0xd8] sm:$0xf]
    %v1547 = vld [vmem:[%s10 + $0xdc] sm:$0xf]
    %v1548 = vld [vmem:[%s10 + $0xe0] sm:$0xf]
    %v1549 = vld [vmem:[%s10 + $0xe4] sm:$0xf]
    %v1550 = vld [vmem:[%s10 + $0xe8] sm:$0xf]
    %v1551 = vld [vmem:[%s10 + $0xec] sm:$0xf]
    %v1552 = vld [vmem:[%s10 + $0xf0] sm:$0xf]
    %v1553 = vld [vmem:[%s10 + $0xf4] sm:$0xf]
    %v1554 = vld [vmem:[%s10 + $0xf8] sm:$0xf]
    %v1555 = vld [vmem:[%s10 + $0xfc] sm:$0xf]
    %v1556 = vld [vmem:[%s12 + $0x4] ss:$0 sm:$0xff]
    %v1621 = vunpack.c.l.b16 %v1492
    %v1622 = vunpack.c.l.b16 %v1493
    %v1623 = vunpack.c.l.b16 %v1494
    %v1624 = vunpack.c.l.b16 %v1495
    %v1625 = vunpack.c.l.b16 %v1496
    %v1626 = vunpack.c.l.b16 %v1497
    %v1627 = vunpack.c.l.b16 %v1498
    %v1628 = vunpack.c.l.b16 %v1499
    %v1629 = vunpack.c.l.b16 %v1500
    %v1630 = vunpack.c.l.b16 %v1501
    %v1631 = vunpack.c.l.b16 %v1502
    %v1632 = vunpack.c.l.b16 %v1503
    %v1633 = vunpack.c.l.b16 %v1504
    %v1634 = vunpack.c.l.b16 %v1505
    %v1635 = vunpack.c.l.b16 %v1506
    %v1636 = vunpack.c.l.b16 %v1507
    %v1637 = vunpack.c.l.b16 %v1508
    %v1638 = vunpack.c.l.b16 %v1509
    %v1639 = vunpack.c.l.b16 %v1510
    %v1640 = vunpack.c.l.b16 %v1511
    %v1641 = vunpack.c.l.b16 %v1512
    %v1642 = vunpack.c.l.b16 %v1513
    %v1643 = vunpack.c.l.b16 %v1514
    %v1644 = vunpack.c.l.b16 %v1515
    %v1645 = vunpack.c.l.b16 %v1516
    %v1646 = vunpack.c.l.b16 %v1517
    %v1647 = vunpack.c.l.b16 %v1518
    %v1648 = vunpack.c.l.b16 %v1519
    %v1649 = vunpack.c.l.b16 %v1520
    %v1650 = vunpack.c.l.b16 %v1521
    %v1651 = vunpack.c.l.b16 %v1522
    %v1652 = vunpack.c.l.b16 %v1523
    %v1653 = vunpack.c.l.b16 %v1524
    %v1654 = vunpack.c.l.b16 %v1525
    %v1655 = vunpack.c.l.b16 %v1526
    %v1656 = vunpack.c.l.b16 %v1527
    %v1657 = vunpack.c.l.b16 %v1528
    %v1658 = vunpack.c.l.b16 %v1529
    %v1659 = vunpack.c.l.b16 %v1530
    %v1660 = vunpack.c.l.b16 %v1531
    %v1661 = vunpack.c.l.b16 %v1532
    %v1662 = vunpack.c.l.b16 %v1533
    %v1663 = vunpack.c.l.b16 %v1534
    %v1664 = vunpack.c.l.b16 %v1535
    %v1665 = vunpack.c.l.b16 %v1536
    %v1666 = vunpack.c.l.b16 %v1537
    %v1667 = vunpack.c.l.b16 %v1538
    %v1668 = vunpack.c.l.b16 %v1539
    %v1669 = vunpack.c.l.b16 %v1540
    %v1670 = vunpack.c.l.b16 %v1541
    %v1671 = vunpack.c.l.b16 %v1542
    %v1672 = vunpack.c.l.b16 %v1543
    %v1673 = vunpack.c.l.b16 %v1544
    %v1674 = vunpack.c.l.b16 %v1545
    %v1675 = vunpack.c.l.b16 %v1546
    %v1676 = vunpack.c.l.b16 %v1547
    %v1677 = vunpack.c.l.b16 %v1548
    %v1678 = vunpack.c.l.b16 %v1549
    %v1679 = vunpack.c.l.b16 %v1550
    %v1680 = vunpack.c.l.b16 %v1551
    %v1681 = vunpack.c.l.b16 %v1552
    %v1682 = vunpack.c.l.b16 %v1553
    %v1683 = vunpack.c.l.b16 %v1554
    %v1684 = vunpack.c.l.b16 %v1555
    %v1685 = vpack.c.b16 %v1622, %v1621
    %v1686 = vpack.c.b16 %v1624, %v1623
    %v1687 = vpack.c.b16 %v1626, %v1625
    %v1688 = vpack.c.b16 %v1628, %v1627
    %v1689 = vpack.c.b16 %v1630, %v1629
    %v1690 = vpack.c.b16 %v1632, %v1631
    %v1691 = vpack.c.b16 %v1634, %v1633
    %v1692 = vpack.c.b16 %v1636, %v1635
    %v1693 = vpack.c.b16 %v1638, %v1637
    %v1694 = vpack.c.b16 %v1640, %v1639
    %v1695 = vpack.c.b16 %v1642, %v1641
    %v1696 = vpack.c.b16 %v1644, %v1643
    %v1697 = vpack.c.b16 %v1646, %v1645
    %v1698 = vpack.c.b16 %v1648, %v1647
    %v1699 = vpack.c.b16 %v1650, %v1649
    %v1700 = vpack.c.b16 %v1652, %v1651
    %v1701 = vpack.c.b16 %v1654, %v1653
    %v1702 = vpack.c.b16 %v1656, %v1655
    %v1703 = vpack.c.b16 %v1658, %v1657
    %v1704 = vpack.c.b16 %v1660, %v1659
    %v1705 = vpack.c.b16 %v1662, %v1661
    %v1706 = vpack.c.b16 %v1664, %v1663
    %v1707 = vpack.c.b16 %v1666, %v1665
    %v1708 = vpack.c.b16 %v1668, %v1667
    %v1709 = vpack.c.b16 %v1670, %v1669
    %v1710 = vpack.c.b16 %v1672, %v1671
    %v1711 = vpack.c.b16 %v1674, %v1673
    %v1712 = vpack.c.b16 %v1676, %v1675
    %v1713 = vpack.c.b16 %v1678, %v1677
    %v1714 = vpack.c.b16 %v1680, %v1679
    %v1715 = vpack.c.b16 %v1682, %v1681
    %v1716 = vpack.c.b16 %v1684, %v1683
    %1749 = vmatprep.subr.bf16.mxu0 0
    %1750 = vmatpush1.bf16.msra.mxu0 %v1692
    %1751 = vmatprep.subr.bf16.mxu0 0
    %1752 = vmatpush1.bf16.msra.mxu0 %v1691
    %1753 = vmatprep.subr.bf16.mxu0 0
    %1754 = vmatpush1.bf16.msra.mxu0 %v1690
    %1755 = vmatprep.subr.bf16.mxu0 0
    %1756 = vmatpush1.bf16.msra.mxu0 %v1689
    %1757 = vmatprep.subr.bf16.mxu0 0
    %1758 = vmatpush1.bf16.msra.mxu0 %v1688
    %1759 = vmatprep.subr.bf16.mxu0 0
    %1760 = vmatpush1.bf16.msra.mxu0 %v1687
    %1761 = vmatprep.subr.bf16.mxu0 0
    %1762 = vmatpush1.bf16.msra.mxu0 %v1686
    %1763 = vmatprep.subr.bf16.mxu0 0
    %1764 = vmatpush1.bf16.msra.mxu0 %v1685
    %1765 = vmatprep.subr.bf16.mxu0 0
    %1766 = vmatpush2.bf16.msra.mxu0 %v1700
    %1767 = vmatprep.subr.bf16.mxu0 0
    %1768 = vmatpush2.bf16.msra.mxu0 %v1699
    %1769 = vmatprep.subr.bf16.mxu0 0
    %1770 = vmatpush2.bf16.msra.mxu0 %v1698
    %1771 = vmatprep.subr.bf16.mxu0 0
    %1772 = vmatpush2.bf16.msra.mxu0 %v1697
    %1773 = vmatprep.subr.bf16.mxu0 0
    %1774 = vmatpush2.bf16.msra.mxu0 %v1696
    %1775 = vmatprep.subr.bf16.mxu0 0
    %1776 = vmatpush2.bf16.msra.mxu0 %v1695
    %1777 = vmatprep.subr.bf16.mxu0 0
    %1778 = vmatpush2.bf16.msra.mxu0 %v1694
    %1779 = vmatprep.subr.bf16.mxu0 0
    %1780 = vmatpush2.bf16.msra.mxu0 %v1693
    %1781 = vmatprep.mubr.bf16.mxu0 %v1489
    %1782 = vmatmul.mubr.bf16.gmra.mxu0 %v1488
    %v1783 = vpop.f32.mrf.mxu0
    %v1784 = vadd.f32 %v1556, %v1783
    %v1785 = vpop.f32.mrf.mxu0
    %v1786 = vpop.f32.mrf.mxu0
    %v1787 = vpop.f32.mrf.mxu0
    %1788 = vdwg.mxu0
    %1789 = vmatprep.subr.bf16.mxu0 0
    %1790 = vmatpush1.bf16.msra.mxu0 %v1708
    %1791 = vmatprep.subr.bf16.mxu0 0
    %1792 = vmatpush1.bf16.msra.mxu0 %v1707
    %1793 = vmatprep.subr.bf16.mxu0 0
    %1794 = vmatpush1.bf16.msra.mxu0 %v1706
    %1795 = vmatprep.subr.bf16.mxu0 0
    %1796 = vmatpush1.bf16.msra.mxu0 %v1705
    %1797 = vmatprep.subr.bf16.mxu0 0
    %1798 = vmatpush1.bf16.msra.mxu0 %v1704
    %1799 = vmatprep.subr.bf16.mxu0 0
    %1800 = vmatpush1.bf16.msra.mxu0 %v1703
    %1801 = vmatprep.subr.bf16.mxu0 0
    %1802 = vmatpush1.bf16.msra.mxu0 %v1702
    %1803 = vmatprep.subr.bf16.mxu0 0
    %1804 = vmatpush1.bf16.msra.mxu0 %v1701
    %1805 = vmatprep.subr.bf16.mxu0 0
    %1806 = vmatpush2.bf16.msra.mxu0 %v1716
    %1807 = vmatprep.subr.bf16.mxu0 0
    %1808 = vmatpush2.bf16.msra.mxu0 %v1715
    %1809 = vmatprep.subr.bf16.mxu0 0
    %1810 = vmatpush2.bf16.msra.mxu0 %v1714
    %1811 = vmatprep.subr.bf16.mxu0 0
    %1812 = vmatpush2.bf16.msra.mxu0 %v1713
    %1813 = vmatprep.subr.bf16.mxu0 0
    %1814 = vmatpush2.bf16.msra.mxu0 %v1712
    %1815 = vmatprep.subr.bf16.mxu0 0
    %1816 = vmatpush2.bf16.msra.mxu0 %v1711
    %1817 = vmatprep.subr.bf16.mxu0 0
    %1818 = vmatpush2.bf16.msra.mxu0 %v1710
    %1819 = vmatprep.subr.bf16.mxu0 0
    %1820 = vmatpush2.bf16.msra.mxu0 %v1709
    %1821 = vmatprep.mubr.bf16.mxu0 %v1491
    %1822 = vmatmul.mubr.bf16.gmra.mxu0 %v1490
    %v1823 = vpop.f32.mrf.mxu0
    %v1824 = vadd.f32 %v1784, %v1823
    %v1825 = vpop.f32.mrf.mxu0
    %v1826 = vpop.f32.mrf.mxu0
    %v1827 = vpop.f32.mrf.mxu0
    %1828 = vdwg.mxu0
    %v1829 = vxor.u32 %v1824, 2147483648
    %v1830 = vmul.f32 %v1829, 1.442695
    %v1831 = vpow.pop %v1830
    %v1832 = vadd.f32 %v1831, 1.0
    %v1833 = vrcp.pop %v1832
    %v1834 = vmul.f32 1.0, %v1833
    %v1835 = vmul.f32 %v1834, 0.9
    %v1836 = vadd.f32 %v1835, 0.1
    %v1837 = vld [vmem:[%s0] sm:$0x3]
    %v1838 = vpack.c.bf16 %v1837, %v1837
    %v1839 = vld [vmem:[%s1] sm:$0xf]
    %v1842 = vunpack.c.l.s4 1983009808
    %v1843 = vunpack.c.0.s8 %v1842
    %v1844 = vlaneseq
    %v1845 = vshrl.u32 %v1844, 7
    %v1846 = vsub.s32 %v1843, %v1845
    %v1847 = vrot.slane %v1839, %v1846
    %v1848 = vcombine.high %v1847, %v1847
    %v1851 = vpack.c.bf16 %v1847, %v1847
    %v1852 = vpack.c.bf16 %v1848, %v1848
    %v1853 = vld [vmem:[%s11] sm:$0xf]
    %v1854 = vld [vmem:[%s11 + $0x4] sm:$0xf]
    %v1855 = vld [vmem:[%s11 + $0x8] sm:$0xf]
    %v1856 = vld [vmem:[%s11 + $0xc] sm:$0xf]
    %v1857 = vld [vmem:[%s11 + $0x10] sm:$0x3]
    %v1858 = vld [vmem:[%s11 + $0x18] sm:$0xf]
    %v1859 = vld [vmem:[%s11 + $0x1c] sm:$0xf]
    %v1860 = vld [vmem:[%s11 + $0x20] sm:$0xf]
    %v1861 = vld [vmem:[%s11 + $0x24] sm:$0xf]
    %v1862 = vld [vmem:[%s11 + $0x28] sm:$0xf]
    %v1863 = vld [vmem:[%s11 + $0x2c] sm:$0xf]
    %v1864 = vld [vmem:[%s11 + $0x30] sm:$0xf]
    %v1865 = vld [vmem:[%s11 + $0x34] sm:$0xf]
    %v1866 = vld [vmem:[%s11 + $0x38] sm:$0xf]
    %v1867 = vld [vmem:[%s11 + $0x3c] sm:$0xf]
    %v1868 = vld [vmem:[%s11 + $0x40] sm:$0xf]
    %v1869 = vld [vmem:[%s11 + $0x44] sm:$0xf]
    %v1870 = vld [vmem:[%s11 + $0x48] sm:$0xf]
    %v1871 = vld [vmem:[%s11 + $0x4c] sm:$0xf]
    %v1872 = vld [vmem:[%s11 + $0x50] sm:$0xf]
    %v1873 = vld [vmem:[%s11 + $0x54] sm:$0xf]
    %v1874 = vld [vmem:[%s11 + $0x58] sm:$0xf]
    %v1875 = vld [vmem:[%s11 + $0x5c] sm:$0xf]
    %v1876 = vld [vmem:[%s11 + $0x60] sm:$0xf]
    %v1877 = vld [vmem:[%s11 + $0x64] sm:$0xf]
    %v1878 = vld [vmem:[%s11 + $0x68] sm:$0xf]
    %v1879 = vld [vmem:[%s11 + $0x6c] sm:$0xf]
    %v1880 = vld [vmem:[%s11 + $0x70] sm:$0xf]
    %v1881 = vld [vmem:[%s11 + $0x74] sm:$0xf]
    %v1882 = vld [vmem:[%s11 + $0x78] sm:$0xf]
    %v1883 = vld [vmem:[%s11 + $0x7c] sm:$0xf]
    %v1884 = vld [vmem:[%s11 + $0x80] sm:$0xf]
    %v1885 = vld [vmem:[%s11 + $0x84] sm:$0xf]
    %v1886 = vld [vmem:[%s11 + $0x88] sm:$0xf]
    %v1887 = vld [vmem:[%s11 + $0x8c] sm:$0xf]
    %v1918 = vunpack.c.l.b16 %v1858
    %v1919 = vunpack.c.l.b16 %v1859
    %v1920 = vunpack.c.l.b16 %v1860
    %v1921 = vunpack.c.l.b16 %v1861
    %v1922 = vunpack.c.l.b16 %v1862
    %v1923 = vunpack.c.l.b16 %v1863
    %v1924 = vunpack.c.l.b16 %v1864
    %v1925 = vunpack.c.l.b16 %v1865
    %v1926 = vunpack.c.l.b16 %v1866
    %v1927 = vunpack.c.l.b16 %v1867
    %v1928 = vunpack.c.l.b16 %v1868
    %v1929 = vunpack.c.l.b16 %v1869
    %v1930 = vunpack.c.l.b16 %v1870
    %v1931 = vunpack.c.l.b16 %v1871
    %v1932 = vunpack.c.l.b16 %v1872
    %v1933 = vunpack.c.l.b16 %v1873
    %v1934 = vunpack.c.l.b16 %v1874
    %v1935 = vunpack.c.l.b16 %v1875
    %v1936 = vunpack.c.l.b16 %v1876
    %v1937 = vunpack.c.l.b16 %v1877
    %v1938 = vunpack.c.l.b16 %v1878
    %v1939 = vunpack.c.l.b16 %v1879
    %v1940 = vunpack.c.l.b16 %v1880
    %v1941 = vunpack.c.l.b16 %v1881
    %v1942 = vunpack.c.l.b16 %v1882
    %v1943 = vunpack.c.l.b16 %v1883
    %v1944 = vunpack.c.l.b16 %v1884
    %v1945 = vunpack.c.l.b16 %v1885
    %v1946 = vunpack.c.l.b16 %v1886
    %v1947 = vunpack.c.l.b16 %v1887
    %v1948 = vpack.c.b16 %v1919, %v1918
    %v1949 = vpack.c.b16 %v1921, %v1920
    %v1950 = vpack.c.b16 %v1923, %v1922
    %v1951 = vpack.c.b16 %v1925, %v1924
    %v1952 = vpack.c.b16 %v1927, %v1926
    %v1953 = vpack.c.b16 %v1929, %v1928
    %v1954 = vpack.c.b16 %v1931, %v1930
    %v1955 = vpack.c.b16 %v1933, %v1932
    %v1956 = vpack.c.b16 %v1935, %v1934
    %v1957 = vpack.c.b16 %v1937, %v1936
    %v1958 = vpack.c.b16 %v1939, %v1938
    %v1959 = vpack.c.b16 %v1941, %v1940
    %v1960 = vpack.c.b16 %v1943, %v1942
    %v1961 = vpack.c.b16 %v1945, %v1944
    %v1962 = vpack.c.b16 %v1947, %v1946
    %vm1978 = vcmask 916480
    %v1980 = vsel %vm1978, %v1852, 0
    %1982 = vmatprep.subr.bf16.mxu0 0
    %1983 = vmatpush1.bf16.msra.mxu0 %v1955
    %1984 = vmatprep.subr.bf16.mxu0 0
    %1985 = vmatpush1.bf16.msra.mxu0 %v1954
    %1986 = vmatprep.subr.bf16.mxu0 0
    %1987 = vmatpush1.bf16.msra.mxu0 %v1953
    %1988 = vmatprep.subr.bf16.mxu0 0
    %1989 = vmatpush1.bf16.msra.mxu0 %v1952
    %1990 = vmatprep.subr.bf16.mxu0 0
    %1991 = vmatpush1.bf16.msra.mxu0 %v1951
    %1992 = vmatprep.subr.bf16.mxu0 0
    %1993 = vmatpush1.bf16.msra.mxu0 %v1950
    %1994 = vmatprep.subr.bf16.mxu0 0
    %1995 = vmatpush1.bf16.msra.mxu0 %v1949
    %1996 = vmatprep.subr.bf16.mxu0 0
    %1997 = vmatpush1.bf16.msra.mxu0 %v1948
    %1998 = vmatprep.subr.bf16.mxu0 0
    %1999 = vmatpush2.bf16.msra.mxu0 0
    %2000 = vmatprep.subr.bf16.mxu0 0
    %2001 = vmatpush2.bf16.msra.mxu0 %v1962
    %2002 = vmatprep.subr.bf16.mxu0 0
    %2003 = vmatpush2.bf16.msra.mxu0 %v1961
    %2004 = vmatprep.subr.bf16.mxu0 0
    %2005 = vmatpush2.bf16.msra.mxu0 %v1960
    %2006 = vmatprep.subr.bf16.mxu0 0
    %2007 = vmatpush2.bf16.msra.mxu0 %v1959
    %2008 = vmatprep.subr.bf16.mxu0 0
    %2009 = vmatpush2.bf16.msra.mxu0 %v1958
    %2010 = vmatprep.subr.bf16.mxu0 0
    %2011 = vmatpush2.bf16.msra.mxu0 %v1957
    %2012 = vmatprep.subr.bf16.mxu0 0
    %2013 = vmatpush2.bf16.msra.mxu0 %v1956
    %2014 = vmatprep.mubr.bf16.mxu0 %v1980
    %2015 = vmatmul.mubr.bf16.gmra.mxu0 %v1851
    %v2016 = vpop.f32.mrf.mxu0
    %v2017 = vadd.f32 0.0, %v2016
    %v2018 = vpop.f32.mrf.mxu0
    %v2019 = vpop.f32.mrf.mxu0
    %v2020 = vpop.f32.mrf.mxu0
    %2021 = vdwg.mxu0
    %v2027 = vunpack.c.l.b16 %v1853
    %v2028 = vunpack.c.l.b16 %v1854
    %v2029 = vunpack.c.l.b16 %v1855
    %v2030 = vunpack.c.l.b16 %v1856
    %v2031 = vunpack.c.l.b16 %v1857
    %v2032 = vpack.c.b16 %v2028, %v2027
    %v2033 = vpack.c.b16 %v2030, %v2029
    %v2034 = vpack.c.b16 %v2031, %v2031
    %vm2037 = vcmask 285696
    %v2039 = vsel %vm2037, %v1838, 0
    %vm2041 = vcmask 1040384
    %vm2042 = vcmask 1041408
    %v2043 = vsel %vm2041, 4294967295, 65535
    %v2044 = vsel %vm2042, %v2043, 0
    %v2046 = vand.u32 %v2034, %v2044
    %2048 = vmatprep.subr.bf16.mxu0 0
    %2049 = vmatpush1.bf16.msra.mxu0 0
    %2050 = vmatprep.subr.bf16.mxu0 0
    %2051 = vmatpush1.bf16.msra.mxu0 0
    %2052 = vmatprep.subr.bf16.mxu0 0
    %2053 = vmatpush1.bf16.msra.mxu0 0
    %2054 = vmatprep.subr.bf16.mxu0 0
    %2055 = vmatpush1.bf16.msra.mxu0 0
    %2056 = vmatprep.subr.bf16.mxu0 0
    %2057 = vmatpush1.bf16.msra.mxu0 0
    %2058 = vmatprep.subr.bf16.mxu0 0
    %2059 = vmatpush1.bf16.msra.mxu0 %v2046
    %2060 = vmatprep.subr.bf16.mxu0 0
    %2061 = vmatpush1.bf16.msra.mxu0 %v2033
    %2062 = vmatprep.subr.bf16.mxu0 0
    %2063 = vmatpush1.bf16.msra.mxu0 %v2032
    %2064 = vmatprep.subr.bf16.mxu0 0
    %2065 = vmatpush2.bf16.msra.mxu0 0
    %2066 = vmatprep.subr.bf16.mxu0 0
    %2067 = vmatpush2.bf16.msra.mxu0 0
    %2068 = vmatprep.subr.bf16.mxu0 0
    %2069 = vmatpush2.bf16.msra.mxu0 0
    %2070 = vmatprep.subr.bf16.mxu0 0
    %2071 = vmatpush2.bf16.msra.mxu0 0
    %2072 = vmatprep.subr.bf16.mxu0 0
    %2073 = vmatpush2.bf16.msra.mxu0 0
    %2074 = vmatprep.subr.bf16.mxu0 0
    %2075 = vmatpush2.bf16.msra.mxu0 0
    %2076 = vmatprep.subr.bf16.mxu0 0
    %2077 = vmatpush2.bf16.msra.mxu0 0
    %2078 = vmatprep.subr.bf16.mxu0 0
    %2079 = vmatpush2.bf16.msra.mxu0 0
    %2080 = vmatprep.mubr.bf16.mxu0 0
    %2081 = vmatmul.mubr.bf16.gmra.mxu0 %v2039
    %v2082 = vpop.f32.mrf.mxu0
    %v2083 = vadd.f32 %v2017, %v2082
    %v2084 = vpop.f32.mrf.mxu0
    %v2085 = vpop.f32.mrf.mxu0
    %v2086 = vpop.f32.mrf.mxu0
    %2087 = vdwg.mxu0
    %v2088 = vld [vmem:[%s12 + $0x2] ss:$0 sm:$0xff]
    %v2089 = vadd.f32 %v2083, %v2088
    %v2090 = vmax.f32 %v2089, 0.0
    %v2091 = vpack.c.bf16 %v2090, %v2090
    %v2092 = vld [vmem:[%s11 + $0x90] sm:$0xf]
    %v2093 = vld [vmem:[%s11 + $0x94] sm:$0xf]
    %v2094 = vld [vmem:[%s11 + $0x98] sm:$0xf]
    %v2095 = vld [vmem:[%s11 + $0x9c] sm:$0xf]
    %v2096 = vld [vmem:[%s12 + $0x3] ss:$0 sm:$0xff]
    %v2101 = vunpack.c.l.b16 %v2092
    %v2102 = vunpack.c.l.b16 %v2093
    %v2103 = vunpack.c.l.b16 %v2094
    %v2104 = vunpack.c.l.b16 %v2095
    %v2105 = vpack.c.b16 %v2102, %v2101
    %v2106 = vpack.c.b16 %v2104, %v2103
    %v2110 = vsel %vm109, %v2091, 0
    %2112 = vmatprep.subr.bf16.mxu0 0
    %2113 = vmatpush1.bf16.msra.mxu0 0
    %2114 = vmatprep.subr.bf16.mxu0 0
    %2115 = vmatpush1.bf16.msra.mxu0 0
    %2116 = vmatprep.subr.bf16.mxu0 0
    %2117 = vmatpush1.bf16.msra.mxu0 0
    %2118 = vmatprep.subr.bf16.mxu0 0
    %2119 = vmatpush1.bf16.msra.mxu0 0
    %2120 = vmatprep.subr.bf16.mxu0 0
    %2121 = vmatpush1.bf16.msra.mxu0 0
    %2122 = vmatprep.subr.bf16.mxu0 0
    %2123 = vmatpush1.bf16.msra.mxu0 0
    %2124 = vmatprep.subr.bf16.mxu0 0
    %2125 = vmatpush1.bf16.msra.mxu0 %v2106
    %2126 = vmatprep.subr.bf16.mxu0 0
    %2127 = vmatpush1.bf16.msra.mxu0 %v2105
    %2128 = vmatprep.subr.bf16.mxu0 0
    %2129 = vmatpush2.bf16.msra.mxu0 0
    %2130 = vmatprep.subr.bf16.mxu0 0
    %2131 = vmatpush2.bf16.msra.mxu0 0
    %2132 = vmatprep.subr.bf16.mxu0 0
    %2133 = vmatpush2.bf16.msra.mxu0 0
    %2134 = vmatprep.subr.bf16.mxu0 0
    %2135 = vmatpush2.bf16.msra.mxu0 0
    %2136 = vmatprep.subr.bf16.mxu0 0
    %2137 = vmatpush2.bf16.msra.mxu0 0
    %2138 = vmatprep.subr.bf16.mxu0 0
    %2139 = vmatpush2.bf16.msra.mxu0 0
    %2140 = vmatprep.subr.bf16.mxu0 0
    %2141 = vmatpush2.bf16.msra.mxu0 0
    %2142 = vmatprep.subr.bf16.mxu0 0
    %2143 = vmatpush2.bf16.msra.mxu0 0
    %2144 = vmatprep.mubr.bf16.mxu0 0
    %2145 = vmatmul.mubr.bf16.gmra.mxu0 %v2110
    %v2146 = vpop.f32.mrf.mxu0
    %v2147 = vadd.f32 %v2096, %v2146
    %v2148 = vpop.f32.mrf.mxu0
    %v2149 = vpop.f32.mrf.mxu0
    %v2150 = vpop.f32.mrf.mxu0
    %2151 = vdwg.mxu0
    %v2152 = vmax.f32 %v2147, 0.0
    %v2153 = vpack.c.bf16 %v2152, %v2152
    %v2154 = vld [vmem:[%s11 + $0xa0] sm:$0xf]
    %v2155 = vld [vmem:[%s11 + $0xa4] sm:$0xf]
    %v2156 = vld [vmem:[%s11 + $0xa8] sm:$0xf]
    %v2157 = vld [vmem:[%s11 + $0xac] sm:$0xf]
    %v2162 = vunpack.c.l.b16 %v2154
    %v2163 = vunpack.c.l.b16 %v2155
    %v2164 = vunpack.c.l.b16 %v2156
    %v2165 = vunpack.c.l.b16 %v2157
    %v2166 = vpack.c.b16 %v2163, %v2162
    %v2167 = vpack.c.b16 %v2165, %v2164
    %v2171 = vsel %vm109, %v2153, 0
    %2173 = vmatprep.subr.bf16.mxu0 0
    %2174 = vmatpush1.bf16.msra.mxu0 0
    %2175 = vmatprep.subr.bf16.mxu0 0
    %2176 = vmatpush1.bf16.msra.mxu0 0
    %2177 = vmatprep.subr.bf16.mxu0 0
    %2178 = vmatpush1.bf16.msra.mxu0 0
    %2179 = vmatprep.subr.bf16.mxu0 0
    %2180 = vmatpush1.bf16.msra.mxu0 0
    %2181 = vmatprep.subr.bf16.mxu0 0
    %2182 = vmatpush1.bf16.msra.mxu0 0
    %2183 = vmatprep.subr.bf16.mxu0 0
    %2184 = vmatpush1.bf16.msra.mxu0 0
    %2185 = vmatprep.subr.bf16.mxu0 0
    %2186 = vmatpush1.bf16.msra.mxu0 %v2167
    %2187 = vmatprep.subr.bf16.mxu0 0
    %2188 = vmatpush1.bf16.msra.mxu0 %v2166
    %2189 = vmatprep.subr.bf16.mxu0 0
    %2190 = vmatpush2.bf16.msra.mxu0 0
    %2191 = vmatprep.subr.bf16.mxu0 0
    %2192 = vmatpush2.bf16.msra.mxu0 0
    %2193 = vmatprep.subr.bf16.mxu0 0
    %2194 = vmatpush2.bf16.msra.mxu0 0
    %2195 = vmatprep.subr.bf16.mxu0 0
    %2196 = vmatpush2.bf16.msra.mxu0 0
    %2197 = vmatprep.subr.bf16.mxu0 0
    %2198 = vmatpush2.bf16.msra.mxu0 0
    %2199 = vmatprep.subr.bf16.mxu0 0
    %2200 = vmatpush2.bf16.msra.mxu0 0
    %2201 = vmatprep.subr.bf16.mxu0 0
    %2202 = vmatpush2.bf16.msra.mxu0 0
    %2203 = vmatprep.subr.bf16.mxu0 0
    %2204 = vmatpush2.bf16.msra.mxu0 0
    %2205 = vmatprep.mubr.bf16.mxu0 0
    %2206 = vmatmul.mubr.bf16.gmra.mxu0 %v2171
    %v2207 = vpop.f32.mrf.mxu0
    %v2208 = vadd.f32 0.0, %v2207
    %v2209 = vpop.f32.mrf.mxu0
    %v2210 = vpop.f32.mrf.mxu0
    %v2211 = vpop.f32.mrf.mxu0
    %2212 = vdwg.mxu0
    %v2213 = vld [vmem:[%s12 + $0x5] ss:$0 sm:$0xff]
    %v2214 = vadd.f32 %v2208, %v2213
    %v2215 = vxor.u32 %v2214, 2147483648
    %v2216 = vmul.f32 %v2215, 1.442695
    %v2217 = vpow.pop %v2216
    %v2218 = vadd.f32 %v2217, 1.0
    %v2219 = vrcp.pop %v2218
    %v2220 = vmul.f32 1.0, %v2219
    %v2221 = vmul.f32 %v2220, 0.9
    %v2222 = vadd.f32 %v2221, 0.1
    %v2223 = vld [vmem:[%s2] sm:$0x3]
    %2225 = vrot.lane.b32.xlu0 %v2223, 2
    %v2226 = vpop.permute.xlu0 %2225
    %v2228 = vmul.f32 %v1836, %v2226
    %2230 = vrot.lane.b32.xlu0 %v2228, 126
    %v2231 = vpop.permute.xlu0 %2230
    %v2233 = vadd.f32 %v1824, %v2231
    %v2234 = vmul.f32 %v2222, %v2223
    %2236 = vrot.lane.b32.xlu0 %v2234, 126
    %v2237 = vpop.permute.xlu0 %2236
    %v2239 = vadd.f32 %v2214, %v2237
    %v2240 = vld [vmem:[%s3] sm:$0x3]
    %vm2241 = vcmp.gt.f32.partialorder %v2240, 0.5
    %v2242 = vsel %vm2241, %v2233, %v2239
    %vm2243 = vcmask 9216
    %2244 = vst.msk [vmem:[#allocation7] sm:$0x3] %vm2243, %v2242
    %v2245 = vld [vmem:[%s4] sm:$0x3]
    %v2246 = vsub.f32 %v2242, %v2245
    %v2247 = vmul.f32 %v2246, %v2246
    %v2248 = vsel %vm2243, %v2247, 0.0
    %2249 = vadd.xlane.f32.xlu0 %v2248
    %v2250 = vpop.xlane.xlu0 %2249
    %v2251 = vrot.slane %v2250, 4
    %v2252 = vadd.f32 %v2250, %v2251
    %v2253 = vrot.slane %v2252, 2
    %v2254 = vadd.f32 %v2252, %v2253
    %v2255 = vrot.slane %v2254, 1
    %v2256 = vadd.f32 %v2254, %v2255
    %s2257 = vtos %v2256
    %v2258 = vstv %s2257
    %v2259 = vmul.f32 %v2258, 0.25
    %vm2260 = vcmask 0
    %2261 = vst.msk [vmem:[#allocation9] sm:$0x1] %vm2260, %v2259
    // Predicated region
    $region58: #{bnn_agent_forward.2} parent=1 // pred_check
      _
    $region59: #{bnn_agent_forward.2} parent=1 // pred_check_branch
      %2263 = sbr.rel (0) target = $region61
    $region60: #{bnn_agent_forward.2} parent=1 // pred_region
      %s2265 = ssub.s32 32, 32
      %2266 = vsyncadd [#allocation8], %s2265
      %s2268 = sshll.u32 [#allocation7], 4
      %s2269 = int_to_ptr.vmem [resolvable:$true] %s2268
      %2271 = dma.vmem_to_hbm [thread:$0]  %s2269, 32, %s15, [#allocation8]
    $region61: #{bnn_agent_forward.2} parent=1 // pred_fallthru
      _
    // Predicated region
    $region62: #{bnn_agent_forward.2} parent=1 // pred_check
      _
    $region63: #{bnn_agent_forward.2} parent=1 // pred_check_branch
      %2273 = sbr.rel (0) target = $region65
    $region64: #{bnn_agent_forward.2} parent=1 // pred_region
      %s2275 = ssub.s32 16, 16
      %2276 = vsyncadd [#allocation10], %s2275
      %s2278 = sshll.u32 [#allocation9], 4
      %s2279 = int_to_ptr.vmem [resolvable:$true] %s2278
      %2281 = dma.vmem_to_hbm [thread:$0]  %s2279, 16, %s16, [#allocation10]
    $region65: #{bnn_agent_forward.2} parent=1 // pred_fallthru
      _
    // Predicated region
    $region66: #{bnn_agent_forward.2} parent=1 // pred_check
      _
    $region67: #{bnn_agent_forward.2} parent=1 // pred_check_branch
      %2283 = sbr.rel (0) target = $region69
    $region68: #{bnn_agent_forward.2} parent=1 // pred_region
      %2284 = dma.done [#allocation8], 32
    $region69: #{bnn_agent_forward.2} parent=1 // pred_fallthru
      _
    // Predicated region
    $region70: #{bnn_agent_forward.2} parent=1 // pred_check
      _
    $region71: #{bnn_agent_forward.2} parent=1 // pred_check_branch
      %2286 = sbr.rel (0) target = $region73
    $region72: #{bnn_agent_forward.2} parent=1 // pred_region
      %2287 = dma.done [#allocation10], 16
    $region73: #{bnn_agent_forward.2} parent=1 // pred_fallthru
      _
    %2288 = vsyncpa [#allocation8], 1
    %2289 = vsyncpa [#allocation10], 1

</llo_original>
